<compile_context>
chip_gen: v7x
topology: tpu7x:2x2x1
jax: 0.10.0
libtpu: 0.0.40
codegen_flags: <defaults>
</compile_context>

<pallas_src>
import functools

import jax
import jax.numpy as jnp
from jax.experimental import pallas as pl
from jax.experimental.pallas import tpu as pltpu

_EPS = 1e-5        # PyTorch BatchNorm2d default eps
_KMAX = 7          # largest conv kernel in the module
_PAD = _KMAX // 2  # single shared padding of the input slab
_NT = 9            # taps of branch-1's second 3x3 conv


# ----------------------------------------------------------------------------
# Fused kernel: the whole MDFC_4 forward in (channels, pixels) layout
# ----------------------------------------------------------------------------
def _mdfc4_kernel(cin, cout,
                  slab_ref, x_ref, mask_ref, wcv_ref, w1b_ref,
                  gam_ref, bet_ref,
                  ct1w_ref, ct1b_ref,
                  ct2w_ref, ct2wf_ref, ct2b_ref,
                  b4w_ref, b4b_ref,
                  ct3w_ref, ct3b_ref,
                  o_ref):
    f32 = jnp.float32
    x = x_ref[...]                                     # (Cin, P)

    def dot(a, b):
        return jnp.dot(a, b, preferred_element_type=f32)

    def stats(z):
        # Training-mode BN stats over all N*H*W pixels (lane reduce), per channel.
        mean = jnp.mean(z, axis=1, keepdims=True)
        zc = z - mean
        var = jnp.mean(zc * zc, axis=1, keepdims=True)  # centered -> >= 0
        return mean, var

    def gb(i):  # static row slice into the packed (4*Cout, 1) gamma / beta
        return (gam_ref[i * cout:(i + 1) * cout, :],
                bet_ref[i * cout:(i + 1) * cout, :])

    def bn_relu(z, i):
        g, b = gb(i)
        mean, var = stats(z)
        scale = g * jax.lax.rsqrt(var + _EPS)
        return jnp.maximum((z - mean) * scale + b, 0.0)

    # ---- every KxK conv of x in ONE MXU matmul against the shared 7x7 slab ----
    convs = dot(wcv_ref[...], slab_ref[...])            # (11*Cout, P)
    z1_all = convs[:_NT * cout, :]                      # branch-1 conv3 @ 9 offsets
    z2 = convs[_NT * cout:(_NT + 1) * cout, :]          # branch-2 conv5
    z3 = convs[(_NT + 1) * cout:(_NT + 2) * cout, :]    # branch-3 conv7

    # ---- branch 1: conv3-BN-ReLU -> conv3-BN-ReLU -> ct1 + x -> ReLU ----------
    g1, b1p = gb(0)
    center = (_NT // 2) * cout                          # center-tap block = true conv1
    mean1, var1 = stats(z1_all[center:center + cout, :])
    a1 = g1 * jax.lax.rsqrt(var1 + _EPS)                # (Cout, 1)
    c1 = b1p - mean1 * a1
    a1t = jnp.concatenate([a1] * _NT, axis=0)           # (9*Cout, 1)
    c1t = jnp.concatenate([c1] * _NT, axis=0)
    # BN affine + ReLU of conv1 at every tap, zeroed where the tap falls outside
    # the image (== zero padding of t1) -> im2col slab of t1 for the second conv.
    t1_slab = jnp.maximum(z1_all * a1t + c1t, 0.0) * mask_ref[...]
    t1 = bn_relu(dot(w1b_ref[...], t1_slab), 1)         # (Cout, P)
    b1 = jnp.maximum(x + dot(ct1w_ref[...], t1) + ct1b_ref[...], 0.0)

    # ---- branch 2: conv5-BN-ReLU; cat(t2, t2) folded into summed ct2 halves ----
    t2 = bn_relu(z2, 2)
    b2 = jnp.maximum(x + dot(ct2wf_ref[...], t2) + ct2b_ref[...], 0.0)

    # ---- branch 3: conv7-BN-ReLU -> ct1 + x -> ReLU ---------------------------
    t3 = bn_relu(z3, 3)
    b3 = jnp.maximum(x + dot(ct1w_ref[...], t3) + ct1b_ref[...], 0.0)

    # ---- branch 4: 1x1 conv with bias ------------------------------------------
    b4 = dot(b4w_ref[...], x) + b4b_ref[...]

    # ---- fusion: ct2(cat(b1,b2,b3,b4)) + x, ReLU (cat folded into 4 column blocks)
    ct2w = ct2w_ref[...]
    fuse = (dot(ct2w[:, 0 * cin:1 * cin], b1) +
            dot(ct2w[:, 1 * cin:2 * cin], b2) +
            dot(ct2w[:, 2 * cin:3 * cin], b3) +
            dot(ct2w[:, 3 * cin:4 * cin], b4))
    b_cat = jnp.maximum(x + fuse + ct2b_ref[...], 0.0)

    # ---- channels_tran_3: lane-dense (Cout, P) output ---------------------------
    o_ref[...] = dot(ct3w_ref[...], b_cat) + ct3b_ref[...]


# ----------------------------------------------------------------------------
# Wrapper: layout plumbing (NCHW <-> (C, P)), im2col slab, weight flattening
# ----------------------------------------------------------------------------
def _embed7(w, top, left):
    """Zero-embed a (Co,Ci,K,K) kernel into the 7x7 tap frame at (top,left) and
    flatten to (Co, 49*Ci) with columns ordered (kh*7+kw)*Ci + ci (slab order)."""
    co, ci, k, _ = w.shape
    wp = jnp.pad(w, ((0, 0), (0, 0),
                     (top, _KMAX - k - top), (left, _KMAX - k - left)))
    return wp.transpose(0, 2, 3, 1).reshape(co, _KMAX * _KMAX * ci)


def _center7(w):
    m = (_KMAX - w.shape[-1]) // 2
    return _embed7(w, m, m)


def mdfc4_forward(x_nchw, p):
    """MDFC_4 forward. x_nchw: (N, Cin, H, W) -> (N, Cout, H, W)."""
    N, Cin, H, W = x_nchw.shape
    Cout = p['b1_w1'].shape[0]
    P = N * H * W

    # Single padded copy of x (max pad = 3) -> shared 7x7 im2col slab (49*Cin, P).
    xp = jnp.pad(x_nchw, ((0, 0), (0, 0), (_PAD, _PAD), (_PAD, _PAD)))
    taps = [xp[:, :, kh:kh + H, kw:kw + W]
            for kh in range(_KMAX) for kw in range(_KMAX)]        # 49 x (N,Ci,H,W)
    slab = (jnp.stack(taps, axis=0)                               # (49,N,Ci,H,W)
            .transpose(0, 2, 1, 3, 4)
            .reshape(_KMAX * _KMAX * Cin, P))                     # row = tap*Ci + ci

    x_cp = x_nchw.transpose(1, 0, 2, 3).reshape(Cin, P)

    # Conv weights flattened against the slab (smaller kernels zero-embedded),
    # all stacked into ONE matmul operand: [conv3 @ 9 offsets | conv5 | conv7].
    offs = [(dh, dw) for dh in (-1, 0, 1) for dw in (-1, 0, 1)]
    m1 = (_KMAX - p['b1_w1'].shape[-1]) // 2
    w1a_all = jnp.concatenate(
        [_embed7(p['b1_w1'], m1 + dh, m1 + dw) for dh, dw in offs], axis=0)
    wcv = jnp.concatenate([w1a_all, _center7(p['b2_w']), _center7(p['b3_w'])],
                          axis=0)                                 # (11*Cout, 49*Cin)
    w1b = p['b1_w2'].transpose(0, 2, 3, 1).reshape(Cout, _NT * Cout)

    # Validity masks for the 9 spatial taps, one row per (tap, channel).
    hh = (jnp.arange(P, dtype=jnp.int32) % (H * W)) // W
    ww = jnp.arange(P, dtype=jnp.int32) % W
    m9 = jnp.stack([((hh + dh >= 0) & (hh + dh < H) &
                     (ww + dw >= 0) & (ww + dw < W)) for dh, dw in offs],
                   axis=0).astype(jnp.float32)                    # (9, P)
    mask72 = jnp.repeat(m9, Cout, axis=0)                         # (9*Cout, P)

    # BN params packed as (4*Cout, 1): [b1 conv1, b1 conv2, b2, b3].
    gam = jnp.concatenate([p['b1_g1'], p['b1_g2'], p['b2_g'], p['b3_g']], 0)[:, None]
    bet = jnp.concatenate([p['b1_b1'], p['b1_b2'], p['b2_b'], p['b3_b']], 0)[:, None]

    # cat(t2, t2) folded into summed weight halves of channels_tran_2.
    ct2wf = p['t2_w'][:, :Cout] + p['t2_w'][:, Cout:]

    args = (slab, x_cp, mask72, wcv, w1b, gam, bet,
            p['t1_w'], p['t1_b'][:, None],
            p['t2_w'], ct2wf, p['t2_b'][:, None],
            p['b4_w'], p['b4_b'][:, None],
            p['t3_w'], p['t3_b'][:, None])

    out_cp = pl.pallas_call(
        functools.partial(_mdfc4_kernel, Cin, Cout),
        out_shape=jax.ShapeDtypeStruct((Cout, P), jnp.float32),
        in_specs=[pl.BlockSpec(memory_space=pltpu.MemorySpace.VMEM)] * len(args),
        out_specs=pl.BlockSpec(memory_space=pltpu.MemorySpace.VMEM),
    )(*args)

    # Lane-dense kernel output -> NCHW (pure wrapper plumbing).
    return out_cp.reshape(Cout, N, H, W).transpose(1, 0, 2, 3)


# ----------------------------------------------------------------------------
# Pure-JAX (XLA) reference of the PyTorch module, for a correctness self-check
# ----------------------------------------------------------------------------
def _conv_ref(x, w, pad):
    return jax.lax.conv_general_dilated(
        x, w, window_strides=(1, 1), padding=[(pad, pad), (pad, pad)],
        dimension_numbers=('NCHW', 'OIHW', 'NCHW'),
        precision=jax.lax.Precision.HIGHEST)


def _bn_relu_ref(z, g, b):
    mean = jnp.mean(z, axis=(0, 2, 3), keepdims=True)
    var = jnp.mean((z - mean) ** 2, axis=(0, 2, 3), keepdims=True)
    y = (z - mean) * jax.lax.rsqrt(var + _EPS) * g[None, :, None, None] \
        + b[None, :, None, None]
    return jnp.maximum(y, 0.0)


def _c1x1_ref(x, w, b):
    return (jnp.einsum('oi,nihw->nohw', w, x,
                       precision=jax.lax.Precision.HIGHEST)
            + b[None, :, None, None])


def mdfc4_reference(x, p):
    relu = lambda v: jnp.maximum(v, 0.0)
    t1 = _bn_relu_ref(_conv_ref(x, p['b1_w1'], 1), p['b1_g1'], p['b1_b1'])
    t1 = _bn_relu_ref(_conv_ref(t1, p['b1_w2'], 1), p['b1_g2'], p['b1_b2'])
    b1 = relu(x + _c1x1_ref(t1, p['t1_w'], p['t1_b']))
    t2 = _bn_relu_ref(_conv_ref(x, p['b2_w'], 2), p['b2_g'], p['b2_b'])
    b2 = relu(x + _c1x1_ref(jnp.concatenate([t2, t2], axis=1),
                            p['t2_w'], p['t2_b']))
    t3 = _bn_relu_ref(_conv_ref(x, p['b3_w'], 3), p['b3_g'], p['b3_b'])
    b3 = relu(x + _c1x1_ref(t3, p['t1_w'], p['t1_b']))
    b4 = _c1x1_ref(x, p['b4_w'], p['b4_b'])
    b_cat = relu(x + _c1x1_ref(jnp.concatenate([b1, b2, b3, b4], axis=1),
                               p['t2_w'], p['t2_b']))
    return _c1x1_ref(b_cat, p['t3_w'], p['t3_b'])


# ----------------------------------------------------------------------------
# Deterministic parameters + smoke / correctness test
# ----------------------------------------------------------------------------
if __name__ == "__main__":
    in_ch, out_ch = 4, 8           # module requires out_channels == 2 * in_channels
    N, H, W = 2, 16, 16
    assert out_ch == 2 * in_ch

    ks = jax.random.split(jax.random.PRNGKey(0), 21)
    wn = lambda k, s: 0.1 * jax.random.normal(k, s, jnp.float32)
    gn = lambda k, s: 1.0 + 0.1 * jax.random.normal(k, s, jnp.float32)

    params = {
        # brance_1
        'b1_w1': wn(ks[0], (out_ch, in_ch, 3, 3)),
        'b1_g1': gn(ks[1], (out_ch,)), 'b1_b1': wn(ks[2], (out_ch,)),
        'b1_w2': wn(ks[3], (out_ch, out_ch, 3, 3)),
        'b1_g2': gn(ks[4], (out_ch,)), 'b1_b2': wn(ks[5], (out_ch,)),
        # brance_2_2
        'b2_w': wn(ks[6], (out_ch, in_ch, 5, 5)),
        'b2_g': gn(ks[7], (out_ch,)), 'b2_b': wn(ks[8], (out_ch,)),
        # brance_3
        'b3_w': wn(ks[9], (out_ch, in_ch, 7, 7)),
        'b3_g': gn(ks[10], (out_ch,)), 'b3_b': wn(ks[11], (out_ch,)),
        # brance_4 (1x1, bias)
        'b4_w': wn(ks[12], (in_ch, in_ch)), 'b4_b': wn(ks[13], (in_ch,)),
        # channels_tran_1 / _2 / _3 (1x1, bias), PyTorch (Cout, Cin) layout
        't1_w': wn(ks[14], (in_ch, 2 * in_ch)), 't1_b': wn(ks[15], (in_ch,)),
        't2_w': wn(ks[16], (in_ch, 4 * in_ch)), 't2_b': wn(ks[17], (in_ch,)),
        't3_w': wn(ks[18], (out_ch, in_ch)), 't3_b': wn(ks[19], (out_ch,)),
    }

    x = jax.random.normal(ks[20], (N, in_ch, H, W), jnp.float32)

    out = jax.jit(mdfc4_forward)(x, params)
    out = jax.block_until_ready(out)
    assert out.shape == (N, out_ch, H, W), out.shape

    ref = mdfc4_reference(x, params)
    tol = 1e-2 * max(1.0, float(jnp.max(jnp.abs(ref))))
    err = float(jnp.max(jnp.abs(out - ref)))
    assert err < tol, f"max |pallas - reference| = {err}"
    print("KERNEL_OK")
</pallas_src>

<mosaic_0001>
module attributes {stable_mosaic.version = 11 : i64} {
  func.func @_mdfc4_kernel(%arg0: memref<196x512xf32, #tpu.memory_space<vmem>>, %arg1: memref<4x512xf32, #tpu.memory_space<vmem>>, %arg2: memref<72x512xf32, #tpu.memory_space<vmem>>, %arg3: memref<88x196xf32, #tpu.memory_space<vmem>>, %arg4: memref<8x72xf32, #tpu.memory_space<vmem>>, %arg5: memref<32x1xf32, #tpu.memory_space<vmem>>, %arg6: memref<32x1xf32, #tpu.memory_space<vmem>>, %arg7: memref<4x8xf32, #tpu.memory_space<vmem>>, %arg8: memref<4x1xf32, #tpu.memory_space<vmem>>, %arg9: memref<4x16xf32, #tpu.memory_space<vmem>>, %arg10: memref<4x8xf32, #tpu.memory_space<vmem>>, %arg11: memref<4x1xf32, #tpu.memory_space<vmem>>, %arg12: memref<4x4xf32, #tpu.memory_space<vmem>>, %arg13: memref<4x1xf32, #tpu.memory_space<vmem>>, %arg14: memref<8x4xf32, #tpu.memory_space<vmem>>, %arg15: memref<8x1xf32, #tpu.memory_space<vmem>>, %arg16: memref<8x512xf32, #tpu.memory_space<vmem>>) attributes {dimension_semantics = [], scalar_prefetch = 0 : i64, scratch_operands = 0 : i64, tpu.core_type = #tpu.core_type<tc>} {
    %c0 = arith.constant 0 : index
    %c0_0 = arith.constant 0 : index
    %0 = vector.load %arg1[%c0, %c0_0] : memref<4x512xf32, #tpu.memory_space<vmem>>, vector<4x512xf32>
    %c0_1 = arith.constant 0 : index
    %c0_2 = arith.constant 0 : index
    %1 = vector.load %arg3[%c0_1, %c0_2] : memref<88x196xf32, #tpu.memory_space<vmem>>, vector<88x196xf32>
    %c0_3 = arith.constant 0 : index
    %c0_4 = arith.constant 0 : index
    %2 = vector.load %arg0[%c0_3, %c0_4] : memref<196x512xf32, #tpu.memory_space<vmem>>, vector<196x512xf32>
    %cst = arith.constant dense<0.000000e+00> : vector<88x512xf32>
    %3 = tpu.matmul %1, %2, %cst {dimension_numbers = #tpu.dot_dimension_numbers<[1], [0], [0], [1], [0, 0, 1, 1], [], []>} : vector<88x196xf32>, vector<196x512xf32>, vector<88x512xf32> -> vector<88x512xf32>
    %4 = vector.extract_strided_slice %3 {offsets = [0, 0], sizes = [72, 512], strides = [1, 1]} : vector<88x512xf32> to vector<72x512xf32>
    %5 = vector.extract_strided_slice %3 {offsets = [72, 0], sizes = [8, 512], strides = [1, 1]} : vector<88x512xf32> to vector<8x512xf32>
    %6 = vector.extract_strided_slice %3 {offsets = [80, 0], sizes = [8, 512], strides = [1, 1]} : vector<88x512xf32> to vector<8x512xf32>
    %c0_5 = arith.constant 0 : index
    %c0_6 = arith.constant 0 : index
    %7 = vector.load %arg5[%c0_5, %c0_6] : memref<32x1xf32, #tpu.memory_space<vmem>>, vector<8x1xf32>
    %c0_7 = arith.constant 0 : index
    %c0_8 = arith.constant 0 : index
    %8 = vector.load %arg6[%c0_7, %c0_8] : memref<32x1xf32, #tpu.memory_space<vmem>>, vector<8x1xf32>
    %9 = vector.extract_strided_slice %4 {offsets = [32, 0], sizes = [8, 512], strides = [1, 1]} : vector<72x512xf32> to vector<8x512xf32>
    %cst_9 = arith.constant dense<0.000000e+00> : vector<8xf32>
    %10 = vector.multi_reduction <add>, %9, %cst_9 [1] : vector<8x512xf32> to vector<8xf32>
    %11 = vector.shape_cast %10 : vector<8xf32> to vector<8x1xf32>
    %cst_10 = arith.constant 5.120000e+02 : f32
    %12 = vector.broadcast %cst_10 : f32 to vector<8x1xf32>
    %13 = arith.divf %11, %12 : vector<8x1xf32>
    %14 = vector.broadcast %13 : vector<8x1xf32> to vector<8x512xf32>
    %15 = arith.subf %9, %14 : vector<8x512xf32>
    %16 = arith.mulf %15, %15 : vector<8x512xf32>
    %cst_11 = arith.constant dense<0.000000e+00> : vector<8xf32>
    %17 = vector.multi_reduction <add>, %16, %cst_11 [1] : vector<8x512xf32> to vector<8xf32>
    %18 = vector.shape_cast %17 : vector<8xf32> to vector<8x1xf32>
    %cst_12 = arith.constant 5.120000e+02 : f32
    %19 = vector.broadcast %cst_12 : f32 to vector<8x1xf32>
    %20 = arith.divf %18, %19 : vector<8x1xf32>
    %cst_13 = arith.constant 9.99999974E-6 : f32
    %21 = vector.broadcast %cst_13 : f32 to vector<8x1xf32>
    %22 = arith.addf %20, %21 : vector<8x1xf32>
    %23 = math.rsqrt %22 : vector<8x1xf32>
    %24 = arith.mulf %7, %23 : vector<8x1xf32>
    %25 = arith.mulf %13, %24 : vector<8x1xf32>
    %26 = arith.subf %8, %25 : vector<8x1xf32>
    %27 = tpu.concatenate %24, %24, %24, %24, %24, %24, %24, %24, %24 in 0 : vector<8x1xf32>, vector<8x1xf32>, vector<8x1xf32>, vector<8x1xf32>, vector<8x1xf32>, vector<8x1xf32>, vector<8x1xf32>, vector<8x1xf32>, vector<8x1xf32> -> vector<72x1xf32>
    %28 = tpu.concatenate %26, %26, %26, %26, %26, %26, %26, %26, %26 in 0 : vector<8x1xf32>, vector<8x1xf32>, vector<8x1xf32>, vector<8x1xf32>, vector<8x1xf32>, vector<8x1xf32>, vector<8x1xf32>, vector<8x1xf32>, vector<8x1xf32> -> vector<72x1xf32>
    %29 = vector.broadcast %27 : vector<72x1xf32> to vector<72x512xf32>
    %30 = arith.mulf %4, %29 : vector<72x512xf32>
    %31 = vector.broadcast %28 : vector<72x1xf32> to vector<72x512xf32>
    %32 = arith.addf %30, %31 : vector<72x512xf32>
    %cst_14 = arith.constant 0.000000e+00 : f32
    %33 = vector.broadcast %cst_14 : f32 to vector<72x512xf32>
    %34 = arith.maximumf %32, %33 : vector<72x512xf32>
    %c0_15 = arith.constant 0 : index
    %c0_16 = arith.constant 0 : index
    %35 = vector.load %arg2[%c0_15, %c0_16] : memref<72x512xf32, #tpu.memory_space<vmem>>, vector<72x512xf32>
    %36 = arith.mulf %34, %35 : vector<72x512xf32>
    %c0_17 = arith.constant 0 : index
    %c0_18 = arith.constant 0 : index
    %37 = vector.load %arg4[%c0_17, %c0_18] : memref<8x72xf32, #tpu.memory_space<vmem>>, vector<8x72xf32>
    %cst_19 = arith.constant dense<0.000000e+00> : vector<8x512xf32>
    %38 = tpu.matmul %37, %36, %cst_19 {dimension_numbers = #tpu.dot_dimension_numbers<[1], [0], [0], [1], [0, 0, 1, 1], [], []>} : vector<8x72xf32>, vector<72x512xf32>, vector<8x512xf32> -> vector<8x512xf32>
    %c8 = arith.constant 8 : index
    %c0_20 = arith.constant 0 : index
    %39 = vector.load %arg5[%c8, %c0_20] : memref<32x1xf32, #tpu.memory_space<vmem>>, vector<8x1xf32>
    %c8_21 = arith.constant 8 : index
    %c0_22 = arith.constant 0 : index
    %40 = vector.load %arg6[%c8_21, %c0_22] : memref<32x1xf32, #tpu.memory_space<vmem>>, vector<8x1xf32>
    %cst_23 = arith.constant dense<0.000000e+00> : vector<8xf32>
    %41 = vector.multi_reduction <add>, %38, %cst_23 [1] : vector<8x512xf32> to vector<8xf32>
    %42 = vector.shape_cast %41 : vector<8xf32> to vector<8x1xf32>
    %cst_24 = arith.constant 5.120000e+02 : f32
    %43 = vector.broadcast %cst_24 : f32 to vector<8x1xf32>
    %44 = arith.divf %42, %43 : vector<8x1xf32>
    %45 = vector.broadcast %44 : vector<8x1xf32> to vector<8x512xf32>
    %46 = arith.subf %38, %45 : vector<8x512xf32>
    %47 = arith.mulf %46, %46 : vector<8x512xf32>
    %cst_25 = arith.constant dense<0.000000e+00> : vector<8xf32>
    %48 = vector.multi_reduction <add>, %47, %cst_25 [1] : vector<8x512xf32> to vector<8xf32>
    %49 = vector.shape_cast %48 : vector<8xf32> to vector<8x1xf32>
    %cst_26 = arith.constant 5.120000e+02 : f32
    %50 = vector.broadcast %cst_26 : f32 to vector<8x1xf32>
    %51 = arith.divf %49, %50 : vector<8x1xf32>
    %cst_27 = arith.constant 9.99999974E-6 : f32
    %52 = vector.broadcast %cst_27 : f32 to vector<8x1xf32>
    %53 = arith.addf %51, %52 : vector<8x1xf32>
    %54 = math.rsqrt %53 : vector<8x1xf32>
    %55 = arith.mulf %39, %54 : vector<8x1xf32>
    %56 = vector.broadcast %44 : vector<8x1xf32> to vector<8x512xf32>
    %57 = arith.subf %38, %56 : vector<8x512xf32>
    %58 = vector.broadcast %55 : vector<8x1xf32> to vector<8x512xf32>
    %59 = arith.mulf %57, %58 : vector<8x512xf32>
    %60 = vector.broadcast %40 : vector<8x1xf32> to vector<8x512xf32>
    %61 = arith.addf %59, %60 : vector<8x512xf32>
    %cst_28 = arith.constant 0.000000e+00 : f32
    %62 = vector.broadcast %cst_28 : f32 to vector<8x512xf32>
    %63 = arith.maximumf %61, %62 : vector<8x512xf32>
    %c0_29 = arith.constant 0 : index
    %c0_30 = arith.constant 0 : index
    %64 = vector.load %arg7[%c0_29, %c0_30] : memref<4x8xf32, #tpu.memory_space<vmem>>, vector<4x8xf32>
    %cst_31 = arith.constant dense<0.000000e+00> : vector<4x512xf32>
    %65 = tpu.matmul %64, %63, %cst_31 {dimension_numbers = #tpu.dot_dimension_numbers<[1], [0], [0], [1], [0, 0, 1, 1], [], []>} : vector<4x8xf32>, vector<8x512xf32>, vector<4x512xf32> -> vector<4x512xf32>
    %66 = arith.addf %0, %65 : vector<4x512xf32>
    %c0_32 = arith.constant 0 : index
    %c0_33 = arith.constant 0 : index
    %67 = vector.load %arg8[%c0_32, %c0_33] : memref<4x1xf32, #tpu.memory_space<vmem>>, vector<4x1xf32>
    %68 = vector.broadcast %67 : vector<4x1xf32> to vector<4x512xf32>
    %69 = arith.addf %66, %68 : vector<4x512xf32>
    %cst_34 = arith.constant 0.000000e+00 : f32
    %70 = vector.broadcast %cst_34 : f32 to vector<4x512xf32>
    %71 = arith.maximumf %69, %70 : vector<4x512xf32>
    %c16 = arith.constant 16 : index
    %c0_35 = arith.constant 0 : index
    %72 = vector.load %arg5[%c16, %c0_35] : memref<32x1xf32, #tpu.memory_space<vmem>>, vector<8x1xf32>
    %c16_36 = arith.constant 16 : index
    %c0_37 = arith.constant 0 : index
    %73 = vector.load %arg6[%c16_36, %c0_37] : memref<32x1xf32, #tpu.memory_space<vmem>>, vector<8x1xf32>
    %cst_38 = arith.constant dense<0.000000e+00> : vector<8xf32>
    %74 = vector.multi_reduction <add>, %5, %cst_38 [1] : vector<8x512xf32> to vector<8xf32>
    %75 = vector.shape_cast %74 : vector<8xf32> to vector<8x1xf32>
    %cst_39 = arith.constant 5.120000e+02 : f32
    %76 = vector.broadcast %cst_39 : f32 to vector<8x1xf32>
    %77 = arith.divf %75, %76 : vector<8x1xf32>
    %78 = vector.broadcast %77 : vector<8x1xf32> to vector<8x512xf32>
    %79 = arith.subf %5, %78 : vector<8x512xf32>
    %80 = arith.mulf %79, %79 : vector<8x512xf32>
    %cst_40 = arith.constant dense<0.000000e+00> : vector<8xf32>
    %81 = vector.multi_reduction <add>, %80, %cst_40 [1] : vector<8x512xf32> to vector<8xf32>
    %82 = vector.shape_cast %81 : vector<8xf32> to vector<8x1xf32>
    %cst_41 = arith.constant 5.120000e+02 : f32
    %83 = vector.broadcast %cst_41 : f32 to vector<8x1xf32>
    %84 = arith.divf %82, %83 : vector<8x1xf32>
    %cst_42 = arith.constant 9.99999974E-6 : f32
    %85 = vector.broadcast %cst_42 : f32 to vector<8x1xf32>
    %86 = arith.addf %84, %85 : vector<8x1xf32>
    %87 = math.rsqrt %86 : vector<8x1xf32>
    %88 = arith.mulf %72, %87 : vector<8x1xf32>
    %89 = vector.broadcast %77 : vector<8x1xf32> to vector<8x512xf32>
    %90 = arith.subf %5, %89 : vector<8x512xf32>
    %91 = vector.broadcast %88 : vector<8x1xf32> to vector<8x512xf32>
    %92 = arith.mulf %90, %91 : vector<8x512xf32>
    %93 = vector.broadcast %73 : vector<8x1xf32> to vector<8x512xf32>
    %94 = arith.addf %92, %93 : vector<8x512xf32>
    %cst_43 = arith.constant 0.000000e+00 : f32
    %95 = vector.broadcast %cst_43 : f32 to vector<8x512xf32>
    %96 = arith.maximumf %94, %95 : vector<8x512xf32>
    %c0_44 = arith.constant 0 : index
    %c0_45 = arith.constant 0 : index
    %97 = vector.load %arg10[%c0_44, %c0_45] : memref<4x8xf32, #tpu.memory_space<vmem>>, vector<4x8xf32>
    %cst_46 = arith.constant dense<0.000000e+00> : vector<4x512xf32>
    %98 = tpu.matmul %97, %96, %cst_46 {dimension_numbers = #tpu.dot_dimension_numbers<[1], [0], [0], [1], [0, 0, 1, 1], [], []>} : vector<4x8xf32>, vector<8x512xf32>, vector<4x512xf32> -> vector<4x512xf32>
    %99 = arith.addf %0, %98 : vector<4x512xf32>
    %c0_47 = arith.constant 0 : index
    %c0_48 = arith.constant 0 : index
    %100 = vector.load %arg11[%c0_47, %c0_48] : memref<4x1xf32, #tpu.memory_space<vmem>>, vector<4x1xf32>
    %101 = vector.broadcast %100 : vector<4x1xf32> to vector<4x512xf32>
    %102 = arith.addf %99, %101 : vector<4x512xf32>
    %cst_49 = arith.constant 0.000000e+00 : f32
    %103 = vector.broadcast %cst_49 : f32 to vector<4x512xf32>
    %104 = arith.maximumf %102, %103 : vector<4x512xf32>
    %c24 = arith.constant 24 : index
    %c0_50 = arith.constant 0 : index
    %105 = vector.load %arg5[%c24, %c0_50] : memref<32x1xf32, #tpu.memory_space<vmem>>, vector<8x1xf32>
    %c24_51 = arith.constant 24 : index
    %c0_52 = arith.constant 0 : index
    %106 = vector.load %arg6[%c24_51, %c0_52] : memref<32x1xf32, #tpu.memory_space<vmem>>, vector<8x1xf32>
    %cst_53 = arith.constant dense<0.000000e+00> : vector<8xf32>
    %107 = vector.multi_reduction <add>, %6, %cst_53 [1] : vector<8x512xf32> to vector<8xf32>
    %108 = vector.shape_cast %107 : vector<8xf32> to vector<8x1xf32>
    %cst_54 = arith.constant 5.120000e+02 : f32
    %109 = vector.broadcast %cst_54 : f32 to vector<8x1xf32>
    %110 = arith.divf %108, %109 : vector<8x1xf32>
    %111 = vector.broadcast %110 : vector<8x1xf32> to vector<8x512xf32>
    %112 = arith.subf %6, %111 : vector<8x512xf32>
    %113 = arith.mulf %112, %112 : vector<8x512xf32>
    %cst_55 = arith.constant dense<0.000000e+00> : vector<8xf32>
    %114 = vector.multi_reduction <add>, %113, %cst_55 [1] : vector<8x512xf32> to vector<8xf32>
    %115 = vector.shape_cast %114 : vector<8xf32> to vector<8x1xf32>
    %cst_56 = arith.constant 5.120000e+02 : f32
    %116 = vector.broadcast %cst_56 : f32 to vector<8x1xf32>
    %117 = arith.divf %115, %116 : vector<8x1xf32>
    %cst_57 = arith.constant 9.99999974E-6 : f32
    %118 = vector.broadcast %cst_57 : f32 to vector<8x1xf32>
    %119 = arith.addf %117, %118 : vector<8x1xf32>
    %120 = math.rsqrt %119 : vector<8x1xf32>
    %121 = arith.mulf %105, %120 : vector<8x1xf32>
    %122 = vector.broadcast %110 : vector<8x1xf32> to vector<8x512xf32>
    %123 = arith.subf %6, %122 : vector<8x512xf32>
    %124 = vector.broadcast %121 : vector<8x1xf32> to vector<8x512xf32>
    %125 = arith.mulf %123, %124 : vector<8x512xf32>
    %126 = vector.broadcast %106 : vector<8x1xf32> to vector<8x512xf32>
    %127 = arith.addf %125, %126 : vector<8x512xf32>
    %cst_58 = arith.constant 0.000000e+00 : f32
    %128 = vector.broadcast %cst_58 : f32 to vector<8x512xf32>
    %129 = arith.maximumf %127, %128 : vector<8x512xf32>
    %c0_59 = arith.constant 0 : index
    %c0_60 = arith.constant 0 : index
    %130 = vector.load %arg7[%c0_59, %c0_60] : memref<4x8xf32, #tpu.memory_space<vmem>>, vector<4x8xf32>
    %cst_61 = arith.constant dense<0.000000e+00> : vector<4x512xf32>
    %131 = tpu.matmul %130, %129, %cst_61 {dimension_numbers = #tpu.dot_dimension_numbers<[1], [0], [0], [1], [0, 0, 1, 1], [], []>} : vector<4x8xf32>, vector<8x512xf32>, vector<4x512xf32> -> vector<4x512xf32>
    %132 = arith.addf %0, %131 : vector<4x512xf32>
    %c0_62 = arith.constant 0 : index
    %c0_63 = arith.constant 0 : index
    %133 = vector.load %arg8[%c0_62, %c0_63] : memref<4x1xf32, #tpu.memory_space<vmem>>, vector<4x1xf32>
    %134 = vector.broadcast %133 : vector<4x1xf32> to vector<4x512xf32>
    %135 = arith.addf %132, %134 : vector<4x512xf32>
    %cst_64 = arith.constant 0.000000e+00 : f32
    %136 = vector.broadcast %cst_64 : f32 to vector<4x512xf32>
    %137 = arith.maximumf %135, %136 : vector<4x512xf32>
    %c0_65 = arith.constant 0 : index
    %c0_66 = arith.constant 0 : index
    %138 = vector.load %arg12[%c0_65, %c0_66] : memref<4x4xf32, #tpu.memory_space<vmem>>, vector<4x4xf32>
    %cst_67 = arith.constant dense<0.000000e+00> : vector<4x512xf32>
    %139 = tpu.matmul %138, %0, %cst_67 {dimension_numbers = #tpu.dot_dimension_numbers<[1], [0], [0], [1], [0, 0, 1, 1], [], []>} : vector<4x4xf32>, vector<4x512xf32>, vector<4x512xf32> -> vector<4x512xf32>
    %c0_68 = arith.constant 0 : index
    %c0_69 = arith.constant 0 : index
    %140 = vector.load %arg13[%c0_68, %c0_69] : memref<4x1xf32, #tpu.memory_space<vmem>>, vector<4x1xf32>
    %141 = vector.broadcast %140 : vector<4x1xf32> to vector<4x512xf32>
    %142 = arith.addf %139, %141 : vector<4x512xf32>
    %c0_70 = arith.constant 0 : index
    %c0_71 = arith.constant 0 : index
    %143 = vector.load %arg9[%c0_70, %c0_71] : memref<4x16xf32, #tpu.memory_space<vmem>>, vector<4x16xf32>
    %144 = vector.extract_strided_slice %143 {offsets = [0, 0], sizes = [4, 4], strides = [1, 1]} : vector<4x16xf32> to vector<4x4xf32>
    %cst_72 = arith.constant dense<0.000000e+00> : vector<4x512xf32>
    %145 = tpu.matmul %144, %71, %cst_72 {dimension_numbers = #tpu.dot_dimension_numbers<[1], [0], [0], [1], [0, 0, 1, 1], [], []>} : vector<4x4xf32>, vector<4x512xf32>, vector<4x512xf32> -> vector<4x512xf32>
    %146 = vector.extract_strided_slice %143 {offsets = [0, 4], sizes = [4, 4], strides = [1, 1]} : vector<4x16xf32> to vector<4x4xf32>
    %cst_73 = arith.constant dense<0.000000e+00> : vector<4x512xf32>
    %147 = tpu.matmul %146, %104, %cst_73 {dimension_numbers = #tpu.dot_dimension_numbers<[1], [0], [0], [1], [0, 0, 1, 1], [], []>} : vector<4x4xf32>, vector<4x512xf32>, vector<4x512xf32> -> vector<4x512xf32>
    %148 = arith.addf %145, %147 : vector<4x512xf32>
    %149 = vector.extract_strided_slice %143 {offsets = [0, 8], sizes = [4, 4], strides = [1, 1]} : vector<4x16xf32> to vector<4x4xf32>
    %cst_74 = arith.constant dense<0.000000e+00> : vector<4x512xf32>
    %150 = tpu.matmul %149, %137, %cst_74 {dimension_numbers = #tpu.dot_dimension_numbers<[1], [0], [0], [1], [0, 0, 1, 1], [], []>} : vector<4x4xf32>, vector<4x512xf32>, vector<4x512xf32> -> vector<4x512xf32>
    %151 = arith.addf %148, %150 : vector<4x512xf32>
    %152 = vector.extract_strided_slice %143 {offsets = [0, 12], sizes = [4, 4], strides = [1, 1]} : vector<4x16xf32> to vector<4x4xf32>
    %cst_75 = arith.constant dense<0.000000e+00> : vector<4x512xf32>
    %153 = tpu.matmul %152, %142, %cst_75 {dimension_numbers = #tpu.dot_dimension_numbers<[1], [0], [0], [1], [0, 0, 1, 1], [], []>} : vector<4x4xf32>, vector<4x512xf32>, vector<4x512xf32> -> vector<4x512xf32>
    %154 = arith.addf %151, %153 : vector<4x512xf32>
    %155 = arith.addf %0, %154 : vector<4x512xf32>
    %c0_76 = arith.constant 0 : index
    %c0_77 = arith.constant 0 : index
    %156 = vector.load %arg11[%c0_76, %c0_77] : memref<4x1xf32, #tpu.memory_space<vmem>>, vector<4x1xf32>
    %157 = vector.broadcast %156 : vector<4x1xf32> to vector<4x512xf32>
    %158 = arith.addf %155, %157 : vector<4x512xf32>
    %cst_78 = arith.constant 0.000000e+00 : f32
    %159 = vector.broadcast %cst_78 : f32 to vector<4x512xf32>
    %160 = arith.maximumf %158, %159 : vector<4x512xf32>
    %c0_79 = arith.constant 0 : index
    %c0_80 = arith.constant 0 : index
    %161 = vector.load %arg14[%c0_79, %c0_80] : memref<8x4xf32, #tpu.memory_space<vmem>>, vector<8x4xf32>
    %cst_81 = arith.constant dense<0.000000e+00> : vector<8x512xf32>
    %162 = tpu.matmul %161, %160, %cst_81 {dimension_numbers = #tpu.dot_dimension_numbers<[1], [0], [0], [1], [0, 0, 1, 1], [], []>} : vector<8x4xf32>, vector<4x512xf32>, vector<8x512xf32> -> vector<8x512xf32>
    %c0_82 = arith.constant 0 : index
    %c0_83 = arith.constant 0 : index
    %163 = vector.load %arg15[%c0_82, %c0_83] : memref<8x1xf32, #tpu.memory_space<vmem>>, vector<8x1xf32>
    %164 = vector.broadcast %163 : vector<8x1xf32> to vector<8x512xf32>
    %165 = arith.addf %162, %164 : vector<8x512xf32>
    %c0_84 = arith.constant 0 : index
    %c0_85 = arith.constant 0 : index
    %166 = vector.load %arg16[%c0_84, %c0_85] : memref<8x512xf32, #tpu.memory_space<vmem>>, vector<8x512xf32>
    tpu.vector_store %arg16[%c0_84, %c0_85], %165 {strides = array<i32>} : memref<8x512xf32, #tpu.memory_space<vmem>>, vector<8x512xf32>,
    return
  }
}

</mosaic_0001>

<llo_original>
// kernel: mdfc4_forward.1
$region0: #{mdfc4_forward.1}
  #allocation0 [shape = 'u32[]', space=smem, size = 0x4, offset = 0x4, fixed_abs, tag = 'smem constant byte address 0x4 - core index']
  #allocation1 [shape = 'u32[144,128]{1,0:T(1,128)}', space=vmem, size = 0x12000, scoped, tag = 'internal scratch']
  %s0 = inlined_call_operand.vmem [shape: f32[196,512], index: 0, kind: input, shape index: {}]
  %s1 = inlined_call_operand.vmem [shape: f32[4,512], index: 1, kind: input, shape index: {}]
  %s2 = inlined_call_operand.vmem [shape: f32[72,512], index: 2, kind: input, shape index: {}]
  %s3 = inlined_call_operand.vmem [shape: f32[88,196], index: 3, kind: input, shape index: {}]
  %s4 = inlined_call_operand.vmem [shape: f32[8,72], index: 4, kind: input, shape index: {}]
  %s5 = inlined_call_operand.vmem [shape: f32[32,1], index: 5, kind: input, shape index: {}]
  %s6 = inlined_call_operand.vmem [shape: f32[32,1], index: 6, kind: input, shape index: {}]
  %s7 = inlined_call_operand.vmem [shape: f32[4,8], index: 7, kind: input, shape index: {}]
  %s8 = inlined_call_operand.vmem [shape: f32[4,1], index: 8, kind: input, shape index: {}]
  %s9 = inlined_call_operand.vmem [shape: f32[4,16], index: 9, kind: input, shape index: {}]
  %s10 = inlined_call_operand.vmem [shape: f32[4,8], index: 10, kind: input, shape index: {}]
  %s11 = inlined_call_operand.vmem [shape: f32[4,1], index: 11, kind: input, shape index: {}]
  %s12 = inlined_call_operand.vmem [shape: f32[4,4], index: 12, kind: input, shape index: {}]
  %s13 = inlined_call_operand.vmem [shape: f32[4,1], index: 13, kind: input, shape index: {}]
  %s14 = inlined_call_operand.vmem [shape: f32[8,4], index: 14, kind: input, shape index: {}]
  %s15 = inlined_call_operand.vmem [shape: f32[8,1], index: 15, kind: input, shape index: {}]
  %s16 = inlined_call_operand.vmem [shape: f32[8,512], index: 16, kind: output, shape index: {}]
  %s17 = sld [smem:[#allocation0]]
  $region74: #{mdfc4_forward.1} parent=0
    _
  %s19 = ssub.s32 1, %s17
  %s20 = scalar_select 0, %s19, %s17
  // Predicated region
  $region2: #{mdfc4_forward.1} parent=0 // pred_check
    _
  $region3: #{mdfc4_forward.1} parent=0 // pred_check_branch
    %22 = sbr.rel (0) target = $region5
  $region4: #{mdfc4_forward.1} parent=0 // pred_region
    _
  $region5: #{mdfc4_forward.1} parent=0 // pred_fallthru
    _
  // Predicated region
  $region6: #{mdfc4_forward.1} parent=0 // pred_check
    _
  $region7: #{mdfc4_forward.1} parent=0 // pred_check_branch
    %24 = sbr.rel (0) target = $region9
  $region8: #{mdfc4_forward.1} parent=0 // pred_region
    _
  $region9: #{mdfc4_forward.1} parent=0 // pred_fallthru
    _
  // Predicated region
  $region10: #{mdfc4_forward.1} parent=0 // pred_check
    _
  $region11: #{mdfc4_forward.1} parent=0 // pred_check_branch
    %26 = sbr.rel (0) target = $region13
  $region12: #{mdfc4_forward.1} parent=0 // pred_region
    _
  $region13: #{mdfc4_forward.1} parent=0 // pred_fallthru
    _
  // Predicated region
  $region14: #{mdfc4_forward.1} parent=0 // pred_check
    _
  $region15: #{mdfc4_forward.1} parent=0 // pred_check_branch
    %28 = sbr.rel (0) target = $region17
  $region16: #{mdfc4_forward.1} parent=0 // pred_region
    _
  $region17: #{mdfc4_forward.1} parent=0 // pred_fallthru
    _
  // Predicated region
  $region18: #{mdfc4_forward.1} parent=0 // pred_check
    _
  $region19: #{mdfc4_forward.1} parent=0 // pred_check_branch
    %30 = sbr.rel (0) target = $region21
  $region20: #{mdfc4_forward.1} parent=0 // pred_region
    _
  $region21: #{mdfc4_forward.1} parent=0 // pred_fallthru
    _
  // Predicated region
  $region22: #{mdfc4_forward.1} parent=0 // pred_check
    _
  $region23: #{mdfc4_forward.1} parent=0 // pred_check_branch
    %32 = sbr.rel (0) target = $region25
  $region24: #{mdfc4_forward.1} parent=0 // pred_region
    _
  $region25: #{mdfc4_forward.1} parent=0 // pred_fallthru
    _
  // Predicated region
  $region26: #{mdfc4_forward.1} parent=0 // pred_check
    _
  $region27: #{mdfc4_forward.1} parent=0 // pred_check_branch
    %34 = sbr.rel (0) target = $region29
  $region28: #{mdfc4_forward.1} parent=0 // pred_region
    _
  $region29: #{mdfc4_forward.1} parent=0 // pred_fallthru
    _
  // Predicated region
  $region30: #{mdfc4_forward.1} parent=0 // pred_check
    _
  $region31: #{mdfc4_forward.1} parent=0 // pred_check_branch
    %36 = sbr.rel (0) target = $region33
  $region32: #{mdfc4_forward.1} parent=0 // pred_region
    _
  $region33: #{mdfc4_forward.1} parent=0 // pred_fallthru
    _
  // Predicated region
  $region34: #{mdfc4_forward.1} parent=0 // pred_check
    _
  $region35: #{mdfc4_forward.1} parent=0 // pred_check_branch
    %38 = sbr.rel (0) target = $region37
  $region36: #{mdfc4_forward.1} parent=0 // pred_region
    _
  $region37: #{mdfc4_forward.1} parent=0 // pred_fallthru
    _
  // Predicated region
  $region38: #{mdfc4_forward.1} parent=0 // pred_check
    _
  $region39: #{mdfc4_forward.1} parent=0 // pred_check_branch
    %40 = sbr.rel (0) target = $region41
  $region40: #{mdfc4_forward.1} parent=0 // pred_region
    _
  $region41: #{mdfc4_forward.1} parent=0 // pred_fallthru
    _
  // Predicated region
  $region42: #{mdfc4_forward.1} parent=0 // pred_check
    _
  $region43: #{mdfc4_forward.1} parent=0 // pred_check_branch
    %42 = sbr.rel (0) target = $region45
  $region44: #{mdfc4_forward.1} parent=0 // pred_region
    _
  $region45: #{mdfc4_forward.1} parent=0 // pred_fallthru
    _
  // Predicated region
  $region46: #{mdfc4_forward.1} parent=0 // pred_check
    _
  $region47: #{mdfc4_forward.1} parent=0 // pred_check_branch
    %44 = sbr.rel (0) target = $region49
  $region48: #{mdfc4_forward.1} parent=0 // pred_region
    _
  $region49: #{mdfc4_forward.1} parent=0 // pred_fallthru
    _
  // Predicated region
  $region50: #{mdfc4_forward.1} parent=0 // pred_check
    _
  $region51: #{mdfc4_forward.1} parent=0 // pred_check_branch
    %46 = sbr.rel (0) target = $region53
  $region52: #{mdfc4_forward.1} parent=0 // pred_region
    _
  $region53: #{mdfc4_forward.1} parent=0 // pred_fallthru
    _
  // Predicated region
  $region54: #{mdfc4_forward.1} parent=0 // pred_check
    _
  $region55: #{mdfc4_forward.1} parent=0 // pred_check_branch
    %48 = sbr.rel (0) target = $region57
  $region56: #{mdfc4_forward.1} parent=0 // pred_region
    _
  $region57: #{mdfc4_forward.1} parent=0 // pred_fallthru
    _
  // Predicated region
  $region58: #{mdfc4_forward.1} parent=0 // pred_check
    _
  $region59: #{mdfc4_forward.1} parent=0 // pred_check_branch
    %50 = sbr.rel (0) target = $region61
  $region60: #{mdfc4_forward.1} parent=0 // pred_region
    _
  $region61: #{mdfc4_forward.1} parent=0 // pred_fallthru
    _
  // Predicated region
  $region62: #{mdfc4_forward.1} parent=0 // pred_check
    _
  $region63: #{mdfc4_forward.1} parent=0 // pred_check_branch
    %52 = sbr.rel (0) target = $region65
  $region64: #{mdfc4_forward.1} parent=0 // pred_region
    _
  $region65: #{mdfc4_forward.1} parent=0 // pred_fallthru
    _
  %v53 = vld [vmem:[%s1] sm:$0xff]
  %v54 = vld [vmem:[%s1 + $0x8] sm:$0xff]
  %v55 = vld [vmem:[%s3] sm:$0xff]
  %v56 = vld [vmem:[%s3 + $0x8] sm:$0xff]
  %v57 = vld [vmem:[%s3 + $0x10] sm:$0xff]
  %v58 = vld [vmem:[%s3 + $0x18] sm:$0xff]
  %v59 = vld [vmem:[%s3 + $0x20] sm:$0xff]
  %v60 = vld [vmem:[%s3 + $0x28] sm:$0xff]
  %v61 = vld [vmem:[%s3 + $0x30] sm:$0xff]
  %v62 = vld [vmem:[%s3 + $0x38] sm:$0xff]
  %v63 = vld [vmem:[%s3 + $0x40] sm:$0xff]
  %v64 = vld [vmem:[%s3 + $0x48] sm:$0xff]
  %v65 = vld [vmem:[%s3 + $0x50] sm:$0xff]
  %v66 = vld [vmem:[%s3 + $0x58] sm:$0xff]
  %v67 = vld [vmem:[%s3 + $0x60] sm:$0xff]
  %v68 = vld [vmem:[%s3 + $0x68] sm:$0xff]
  %v69 = vld [vmem:[%s3 + $0x70] sm:$0xff]
  %v70 = vld [vmem:[%s3 + $0x78] sm:$0xff]
  %v71 = vld [vmem:[%s3 + $0x80] sm:$0xff]
  %v72 = vld [vmem:[%s3 + $0x88] sm:$0xff]
  %v73 = vld [vmem:[%s3 + $0x90] sm:$0xff]
  %v74 = vld [vmem:[%s3 + $0x98] sm:$0xff]
  %v75 = vld [vmem:[%s3 + $0xa0] sm:$0xff]
  %v76 = vld [vmem:[%s3 + $0xa8] sm:$0xff]
  %v77 = vld [vmem:[%s0] sm:$0xff]
  %v78 = vld [vmem:[%s0 + $0x8] sm:$0xff]
  %v79 = vld [vmem:[%s0 + $0x10] sm:$0xff]
  %v80 = vld [vmem:[%s0 + $0x18] sm:$0xff]
  %v81 = vld [vmem:[%s0 + $0x20] sm:$0xff]
  %v82 = vld [vmem:[%s0 + $0x28] sm:$0xff]
  %v83 = vld [vmem:[%s0 + $0x30] sm:$0xff]
  %v84 = vld [vmem:[%s0 + $0x38] sm:$0xff]
  %v85 = vld [vmem:[%s0 + $0x40] sm:$0xff]
  %v86 = vld [vmem:[%s0 + $0x48] sm:$0xff]
  %v87 = vld [vmem:[%s0 + $0x50] sm:$0xff]
  %v88 = vld [vmem:[%s0 + $0x58] sm:$0xff]
  %v89 = vld [vmem:[%s0 + $0x60] sm:$0xff]
  %v90 = vld [vmem:[%s0 + $0x68] sm:$0xff]
  %v91 = vld [vmem:[%s0 + $0x70] sm:$0xff]
  %v92 = vld [vmem:[%s0 + $0x78] sm:$0xff]
  %v93 = vld [vmem:[%s0 + $0x80] sm:$0xff]
  %v94 = vld [vmem:[%s0 + $0x88] sm:$0xff]
  %v95 = vld [vmem:[%s0 + $0x90] sm:$0xff]
  %v96 = vld [vmem:[%s0 + $0x98] sm:$0xff]
  %v97 = vld [vmem:[%s0 + $0xa0] sm:$0xff]
  %v98 = vld [vmem:[%s0 + $0xa8] sm:$0xff]
  %v99 = vld [vmem:[%s0 + $0xb0] sm:$0xff]
  %v100 = vld [vmem:[%s0 + $0xb8] sm:$0xff]
  %v101 = vld [vmem:[%s0 + $0xc0] sm:$0xff]
  %v102 = vld [vmem:[%s0 + $0xc8] sm:$0xff]
  %v103 = vld [vmem:[%s0 + $0xd0] sm:$0xff]
  %v104 = vld [vmem:[%s0 + $0xd8] sm:$0xff]
  %v105 = vld [vmem:[%s0 + $0xe0] sm:$0xff]
  %v106 = vld [vmem:[%s0 + $0xe8] sm:$0xff]
  %v107 = vld [vmem:[%s0 + $0xf0] sm:$0xff]
  %v108 = vld [vmem:[%s0 + $0xf8] sm:$0xff]
  %v109 = vld [vmem:[%s0 + $0x100] sm:$0xff]
  %v110 = vld [vmem:[%s0 + $0x108] sm:$0xff]
  %v111 = vld [vmem:[%s0 + $0x110] sm:$0xff]
  %v112 = vld [vmem:[%s0 + $0x118] sm:$0xff]
  %v113 = vld [vmem:[%s0 + $0x120] sm:$0xff]
  %v114 = vld [vmem:[%s0 + $0x128] sm:$0xff]
  %v115 = vld [vmem:[%s0 + $0x130] sm:$0xff]
  %v116 = vld [vmem:[%s0 + $0x138] sm:$0xff]
  %v117 = vld [vmem:[%s0 + $0x140] sm:$0xff]
  %v118 = vld [vmem:[%s0 + $0x148] sm:$0xff]
  %v119 = vld [vmem:[%s0 + $0x150] sm:$0xff]
  %v120 = vld [vmem:[%s0 + $0x158] sm:$0xff]
  %v121 = vld [vmem:[%s0 + $0x160] sm:$0xff]
  %v122 = vld [vmem:[%s0 + $0x168] sm:$0xff]
  %v123 = vld [vmem:[%s0 + $0x170] sm:$0xff]
  %v124 = vld [vmem:[%s0 + $0x178] sm:$0xff]
  %v125 = vld [vmem:[%s0 + $0x180] sm:$0xff]
  %v126 = vld [vmem:[%s0 + $0x188] sm:$0xff]
  %v127 = vld [vmem:[%s0 + $0x190] sm:$0xff]
  %v128 = vld [vmem:[%s0 + $0x198] sm:$0xff]
  %v129 = vld [vmem:[%s0 + $0x1a0] sm:$0xff]
  %v130 = vld [vmem:[%s0 + $0x1a8] sm:$0xff]
  %v131 = vld [vmem:[%s0 + $0x1b0] sm:$0xff]
  %v132 = vld [vmem:[%s0 + $0x1b8] sm:$0xff]
  %v133 = vld [vmem:[%s0 + $0x1c0] sm:$0xff]
  %v134 = vld [vmem:[%s0 + $0x1c8] sm:$0xff]
  %v135 = vld [vmem:[%s0 + $0x1d0] sm:$0xff]
  %v136 = vld [vmem:[%s0 + $0x1d8] sm:$0xff]
  %v137 = vld [vmem:[%s0 + $0x1e0] sm:$0xff]
  %v138 = vld [vmem:[%s0 + $0x1e8] sm:$0xff]
  %v139 = vld [vmem:[%s0 + $0x1f0] sm:$0xff]
  %v140 = vld [vmem:[%s0 + $0x1f8] sm:$0xff]
  %v141 = vld [vmem:[%s0 + $0x200] sm:$0xff]
  %v142 = vld [vmem:[%s0 + $0x208] sm:$0xff]
  %v143 = vld [vmem:[%s0 + $0x210] sm:$0xff]
  %v144 = vld [vmem:[%s0 + $0x218] sm:$0xff]
  %v145 = vld [vmem:[%s0 + $0x220] sm:$0xff]
  %v146 = vld [vmem:[%s0 + $0x228] sm:$0xff]
  %v147 = vld [vmem:[%s0 + $0x230] sm:$0xff]
  %v148 = vld [vmem:[%s0 + $0x238] sm:$0xff]
  %v149 = vld [vmem:[%s0 + $0x240] sm:$0xff]
  %v150 = vld [vmem:[%s0 + $0x248] sm:$0xff]
  %v151 = vld [vmem:[%s0 + $0x250] sm:$0xff]
  %v152 = vld [vmem:[%s0 + $0x258] sm:$0xff]
  %v153 = vld [vmem:[%s0 + $0x260] sm:$0xff]
  %v154 = vld [vmem:[%s0 + $0x268] sm:$0xff]
  %v155 = vld [vmem:[%s0 + $0x270] sm:$0xff]
  %v156 = vld [vmem:[%s0 + $0x278] sm:$0xff]
  %v157 = vld [vmem:[%s0 + $0x280] sm:$0xff]
  %v158 = vld [vmem:[%s0 + $0x288] sm:$0xff]
  %v159 = vld [vmem:[%s0 + $0x290] sm:$0xff]
  %v160 = vld [vmem:[%s0 + $0x298] sm:$0xff]
  %v161 = vld [vmem:[%s0 + $0x2a0] sm:$0xff]
  %v162 = vld [vmem:[%s0 + $0x2a8] sm:$0xff]
  %v163 = vld [vmem:[%s0 + $0x2b0] sm:$0xff]
  %v164 = vld [vmem:[%s0 + $0x2b8] sm:$0xff]
  %v165 = vld [vmem:[%s0 + $0x2c0] sm:$0xff]
  %v166 = vld [vmem:[%s0 + $0x2c8] sm:$0xff]
  %v167 = vld [vmem:[%s0 + $0x2d0] sm:$0xff]
  %v168 = vld [vmem:[%s0 + $0x2d8] sm:$0xff]
  %v169 = vld [vmem:[%s0 + $0x2e0] sm:$0xff]
  %v170 = vld [vmem:[%s0 + $0x2e8] sm:$0xff]
  %v171 = vld [vmem:[%s0 + $0x2f0] sm:$0xff]
  %v172 = vld [vmem:[%s0 + $0x2f8] sm:$0xff]
  %v173 = vld [vmem:[%s0 + $0x300] sm:$0xf]
  %v174 = vld [vmem:[%s0 + $0x308] sm:$0xf]
  %v175 = vld [vmem:[%s0 + $0x310] sm:$0xf]
  %v176 = vld [vmem:[%s0 + $0x318] sm:$0xf]
  %vm177 = vcmask 556032
  %v179 = vsel %vm177, %v56, 0
  %v182 = vsel %vm177, %v58, 0
  %v185 = vsel %vm177, %v60, 0
  %v188 = vsel %vm177, %v62, 0
  %v191 = vsel %vm177, %v64, 0
  %v194 = vsel %vm177, %v66, 0
  %v197 = vsel %vm177, %v68, 0
  %v200 = vsel %vm177, %v70, 0
  %v203 = vsel %vm177, %v72, 0
  %v206 = vsel %vm177, %v74, 0
  %v209 = vsel %vm177, %v76, 0
  %vm211 = vcmask 1043456
  %v213 = vsel %vm211, %v173, 0
  %v216 = vsel %vm211, %v174, 0
  %v219 = vsel %vm211, %v175, 0
  %v222 = vsel %vm211, %v176, 0
  %224 = vmatprep.subr.mxu0 %v78
  %225 = vmatpush1.msra.mxu0 %v77
  %226 = vmatprep.subr.mxu0 %v82
  %227 = vmatpush1.msra.mxu0 %v81
  %228 = vmatprep.subr.mxu0 %v86
  %229 = vmatpush1.msra.mxu0 %v85
  %230 = vmatprep.subr.mxu0 %v90
  %231 = vmatpush1.msra.mxu0 %v89
  %232 = vmatprep.subr.mxu0 %v94
  %233 = vmatpush1.msra.mxu0 %v93
  %234 = vmatprep.subr.mxu0 %v98
  %235 = vmatpush1.msra.mxu0 %v97
  %236 = vmatprep.subr.mxu0 %v102
  %237 = vmatpush1.msra.mxu0 %v101
  %238 = vmatprep.subr.mxu0 %v106
  %239 = vmatpush1.msra.mxu0 %v105
  %240 = vmatprep.subr.mxu0 %v110
  %241 = vmatpush1.msra.mxu0 %v109
  %242 = vmatprep.subr.mxu0 %v114
  %243 = vmatpush1.msra.mxu0 %v113
  %244 = vmatprep.subr.mxu0 %v118
  %245 = vmatpush1.msra.mxu0 %v117
  %246 = vmatprep.subr.mxu0 %v122
  %247 = vmatpush1.msra.mxu0 %v121
  %248 = vmatprep.subr.mxu0 %v126
  %249 = vmatpush1.msra.mxu0 %v125
  %250 = vmatprep.subr.mxu0 %v130
  %251 = vmatpush1.msra.mxu0 %v129
  %252 = vmatprep.subr.mxu0 %v134
  %253 = vmatpush1.msra.mxu0 %v133
  %254 = vmatprep.subr.mxu0 %v138
  %255 = vmatpush1.msra.mxu0 %v137
  %256 = vmatprep.subr.mxu0 %v142
  %257 = vmatpush1.msra.mxu0 %v141
  %258 = vmatprep.subr.mxu0 %v146
  %259 = vmatpush1.msra.mxu0 %v145
  %260 = vmatprep.subr.mxu0 %v150
  %261 = vmatpush1.msra.mxu0 %v149
  %262 = vmatprep.subr.mxu0 %v154
  %263 = vmatpush1.msra.mxu0 %v153
  %264 = vmatprep.subr.mxu0 %v158
  %265 = vmatpush1.msra.mxu0 %v157
  %266 = vmatprep.subr.mxu0 %v162
  %267 = vmatpush1.msra.mxu0 %v161
  %268 = vmatprep.subr.mxu0 %v166
  %269 = vmatpush1.msra.mxu0 %v165
  %270 = vmatprep.subr.mxu0 %v170
  %271 = vmatpush1.msra.mxu0 %v169
  %272 = vmatprep.subr.mxu0 %v216
  %273 = vmatpush1.msra.mxu0 %v213
  %274 = vmatprep.subr.mxu0 0.0
  %275 = vmatpush1.msra.mxu0 0.0
  %276 = vmatprep.subr.mxu0 0.0
  %277 = vmatpush1.msra.mxu0 0.0
  %278 = vmatprep.subr.mxu0 0.0
  %279 = vmatpush1.msra.mxu0 0.0
  %280 = vmatprep.subr.mxu0 0.0
  %281 = vmatpush1.msra.mxu0 0.0
  %282 = vmatprep.subr.mxu0 0.0
  %283 = vmatpush1.msra.mxu0 0.0
  %284 = vmatprep.subr.mxu0 0.0
  %285 = vmatpush1.msra.mxu0 0.0
  %286 = vmatprep.subr.mxu0 0.0
  %287 = vmatpush1.msra.mxu0 0.0
  %288 = vmatprep.mubr.f32.mxu0 %v179
  %289 = vmatmul.mubr.f32.gmra.mrb[0].mxu0 %v55
  %v290 = vpop.f32.mrb[0].mxu0
  %v291 = vadd.f32 0.0, %v290
  %v292 = vpop.f32.mrb[0].mxu0
  %v293 = vadd.f32 0.0, %v292
  %294 = vmatprep.mubr.f32.mxu0 %v182
  %295 = vmatmul.mubr.f32.gmra.mrb[0].mxu0 %v57
  %v296 = vpop.f32.mrb[0].mxu0
  %v297 = vadd.f32 0.0, %v296
  %v298 = vpop.f32.mrb[0].mxu0
  %v299 = vadd.f32 0.0, %v298
  %300 = vmatprep.mubr.f32.mxu0 %v185
  %301 = vmatmul.mubr.f32.gmra.mrb[0].mxu0 %v59
  %v302 = vpop.f32.mrb[0].mxu0
  %v303 = vadd.f32 0.0, %v302
  %v304 = vpop.f32.mrb[0].mxu0
  %v305 = vadd.f32 0.0, %v304
  %306 = vmatprep.mubr.f32.mxu0 %v188
  %307 = vmatmul.mubr.f32.gmra.mrb[0].mxu0 %v61
  %v308 = vpop.f32.mrb[0].mxu0
  %v309 = vadd.f32 0.0, %v308
  %v310 = vpop.f32.mrb[0].mxu0
  %v311 = vadd.f32 0.0, %v310
  %312 = vmatprep.mubr.f32.mxu0 %v191
  %313 = vmatmul.mubr.f32.gmra.mrb[0].mxu0 %v63
  %v314 = vpop.f32.mrb[0].mxu0
  %v315 = vadd.f32 0.0, %v314
  %v316 = vpop.f32.mrb[0].mxu0
  %v317 = vadd.f32 0.0, %v316
  %318 = vmatprep.mubr.f32.mxu0 %v194
  %319 = vmatmul.mubr.f32.gmra.mrb[0].mxu0 %v65
  %v320 = vpop.f32.mrb[0].mxu0
  %v321 = vadd.f32 0.0, %v320
  %v322 = vpop.f32.mrb[0].mxu0
  %v323 = vadd.f32 0.0, %v322
  %324 = vmatprep.mubr.f32.mxu0 %v197
  %325 = vmatmul.mubr.f32.gmra.mrb[0].mxu0 %v67
  %v326 = vpop.f32.mrb[0].mxu0
  %v327 = vadd.f32 0.0, %v326
  %v328 = vpop.f32.mrb[0].mxu0
  %v329 = vadd.f32 0.0, %v328
  %330 = vmatprep.mubr.f32.mxu0 %v200
  %331 = vmatmul.mubr.f32.gmra.mrb[0].mxu0 %v69
  %v332 = vpop.f32.mrb[0].mxu0
  %v333 = vadd.f32 0.0, %v332
  %v334 = vpop.f32.mrb[0].mxu0
  %v335 = vadd.f32 0.0, %v334
  %336 = vmatprep.mubr.f32.mxu0 %v203
  %337 = vmatmul.mubr.f32.gmra.mrb[0].mxu0 %v71
  %v338 = vpop.f32.mrb[0].mxu0
  %v339 = vadd.f32 0.0, %v338
  %v340 = vpop.f32.mrb[0].mxu0
  %v341 = vadd.f32 0.0, %v340
  %342 = vmatprep.mubr.f32.mxu0 %v206
  %343 = vmatmul.mubr.f32.gmra.mrb[0].mxu0 %v73
  %v344 = vpop.f32.mrb[0].mxu0
  %v345 = vadd.f32 0.0, %v344
  %v346 = vpop.f32.mrb[0].mxu0
  %v347 = vadd.f32 0.0, %v346
  %348 = vmatprep.mubr.f32.mxu0 %v209
  %349 = vmatmul.mubr.f32.gmra.mrb[0].mxu0 %v75
  %v350 = vpop.f32.mrb[0].mxu0
  %v351 = vadd.f32 0.0, %v350
  %v352 = vpop.f32.mrb[0].mxu0
  %v353 = vadd.f32 0.0, %v352
  %354 = vdwg.mxu0
  %355 = vmatprep.subr.mxu0 %v80
  %356 = vmatpush1.msra.mxu0 %v79
  %357 = vmatprep.subr.mxu0 %v84
  %358 = vmatpush1.msra.mxu0 %v83
  %359 = vmatprep.subr.mxu0 %v88
  %360 = vmatpush1.msra.mxu0 %v87
  %361 = vmatprep.subr.mxu0 %v92
  %362 = vmatpush1.msra.mxu0 %v91
  %363 = vmatprep.subr.mxu0 %v96
  %364 = vmatpush1.msra.mxu0 %v95
  %365 = vmatprep.subr.mxu0 %v100
  %366 = vmatpush1.msra.mxu0 %v99
  %367 = vmatprep.subr.mxu0 %v104
  %368 = vmatpush1.msra.mxu0 %v103
  %369 = vmatprep.subr.mxu0 %v108
  %370 = vmatpush1.msra.mxu0 %v107
  %371 = vmatprep.subr.mxu0 %v112
  %372 = vmatpush1.msra.mxu0 %v111
  %373 = vmatprep.subr.mxu0 %v116
  %374 = vmatpush1.msra.mxu0 %v115
  %375 = vmatprep.subr.mxu0 %v120
  %376 = vmatpush1.msra.mxu0 %v119
  %377 = vmatprep.subr.mxu0 %v124
  %378 = vmatpush1.msra.mxu0 %v123
  %379 = vmatprep.subr.mxu0 %v128
  %380 = vmatpush1.msra.mxu0 %v127
  %381 = vmatprep.subr.mxu0 %v132
  %382 = vmatpush1.msra.mxu0 %v131
  %383 = vmatprep.subr.mxu0 %v136
  %384 = vmatpush1.msra.mxu0 %v135
  %385 = vmatprep.subr.mxu0 %v140
  %386 = vmatpush1.msra.mxu0 %v139
  %387 = vmatprep.subr.mxu0 %v144
  %388 = vmatpush1.msra.mxu0 %v143
  %389 = vmatprep.subr.mxu0 %v148
  %390 = vmatpush1.msra.mxu0 %v147
  %391 = vmatprep.subr.mxu0 %v152
  %392 = vmatpush1.msra.mxu0 %v151
  %393 = vmatprep.subr.mxu0 %v156
  %394 = vmatpush1.msra.mxu0 %v155
  %395 = vmatprep.subr.mxu0 %v160
  %396 = vmatpush1.msra.mxu0 %v159
  %397 = vmatprep.subr.mxu0 %v164
  %398 = vmatpush1.msra.mxu0 %v163
  %399 = vmatprep.subr.mxu0 %v168
  %400 = vmatpush1.msra.mxu0 %v167
  %401 = vmatprep.subr.mxu0 %v172
  %402 = vmatpush1.msra.mxu0 %v171
  %403 = vmatprep.subr.mxu0 %v222
  %404 = vmatpush1.msra.mxu0 %v219
  %405 = vmatprep.subr.mxu0 0.0
  %406 = vmatpush1.msra.mxu0 0.0
  %407 = vmatprep.subr.mxu0 0.0
  %408 = vmatpush1.msra.mxu0 0.0
  %409 = vmatprep.subr.mxu0 0.0
  %410 = vmatpush1.msra.mxu0 0.0
  %411 = vmatprep.subr.mxu0 0.0
  %412 = vmatpush1.msra.mxu0 0.0
  %413 = vmatprep.subr.mxu0 0.0
  %414 = vmatpush1.msra.mxu0 0.0
  %415 = vmatprep.subr.mxu0 0.0
  %416 = vmatpush1.msra.mxu0 0.0
  %417 = vmatprep.subr.mxu0 0.0
  %418 = vmatpush1.msra.mxu0 0.0
  %419 = vmatprep.mubr.f32.mxu0 %v179
  %420 = vmatmul.mubr.f32.gmra.mrb[0].mxu0 %v55
  %v421 = vpop.f32.mrb[0].mxu0
  %v422 = vadd.f32 0.0, %v421
  %v423 = vpop.f32.mrb[0].mxu0
  %v424 = vadd.f32 0.0, %v423
  %425 = vmatprep.mubr.f32.mxu0 %v182
  %426 = vmatmul.mubr.f32.gmra.mrb[0].mxu0 %v57
  %v427 = vpop.f32.mrb[0].mxu0
  %v428 = vadd.f32 0.0, %v427
  %v429 = vpop.f32.mrb[0].mxu0
  %v430 = vadd.f32 0.0, %v429
  %431 = vmatprep.mubr.f32.mxu0 %v185
  %432 = vmatmul.mubr.f32.gmra.mrb[0].mxu0 %v59
  %v433 = vpop.f32.mrb[0].mxu0
  %v434 = vadd.f32 0.0, %v433
  %v435 = vpop.f32.mrb[0].mxu0
  %v436 = vadd.f32 0.0, %v435
  %437 = vmatprep.mubr.f32.mxu0 %v188
  %438 = vmatmul.mubr.f32.gmra.mrb[0].mxu0 %v61
  %v439 = vpop.f32.mrb[0].mxu0
  %v440 = vadd.f32 0.0, %v439
  %v441 = vpop.f32.mrb[0].mxu0
  %v442 = vadd.f32 0.0, %v441
  %443 = vmatprep.mubr.f32.mxu0 %v191
  %444 = vmatmul.mubr.f32.gmra.mrb[0].mxu0 %v63
  %v445 = vpop.f32.mrb[0].mxu0
  %v446 = vadd.f32 0.0, %v445
  %v447 = vpop.f32.mrb[0].mxu0
  %v448 = vadd.f32 0.0, %v447
  %449 = vmatprep.mubr.f32.mxu0 %v194
  %450 = vmatmul.mubr.f32.gmra.mrb[0].mxu0 %v65
  %v451 = vpop.f32.mrb[0].mxu0
  %v452 = vadd.f32 0.0, %v451
  %v453 = vpop.f32.mrb[0].mxu0
  %v454 = vadd.f32 0.0, %v453
  %455 = vmatprep.mubr.f32.mxu0 %v197
  %456 = vmatmul.mubr.f32.gmra.mrb[0].mxu0 %v67
  %v457 = vpop.f32.mrb[0].mxu0
  %v458 = vadd.f32 0.0, %v457
  %v459 = vpop.f32.mrb[0].mxu0
  %v460 = vadd.f32 0.0, %v459
  %461 = vmatprep.mubr.f32.mxu0 %v200
  %462 = vmatmul.mubr.f32.gmra.mrb[0].mxu0 %v69
  %v463 = vpop.f32.mrb[0].mxu0
  %v464 = vadd.f32 0.0, %v463
  %v465 = vpop.f32.mrb[0].mxu0
  %v466 = vadd.f32 0.0, %v465
  %467 = vmatprep.mubr.f32.mxu0 %v203
  %468 = vmatmul.mubr.f32.gmra.mrb[0].mxu0 %v71
  %v469 = vpop.f32.mrb[0].mxu0
  %v470 = vadd.f32 0.0, %v469
  %v471 = vpop.f32.mrb[0].mxu0
  %v472 = vadd.f32 0.0, %v471
  %473 = vmatprep.mubr.f32.mxu0 %v206
  %474 = vmatmul.mubr.f32.gmra.mrb[0].mxu0 %v73
  %v475 = vpop.f32.mrb[0].mxu0
  %v476 = vadd.f32 0.0, %v475
  %v477 = vpop.f32.mrb[0].mxu0
  %v478 = vadd.f32 0.0, %v477
  %479 = vmatprep.mubr.f32.mxu0 %v209
  %480 = vmatmul.mubr.f32.gmra.mrb[0].mxu0 %v75
  %v481 = vpop.f32.mrb[0].mxu0
  %v482 = vadd.f32 0.0, %v481
  %v483 = vpop.f32.mrb[0].mxu0
  %v484 = vadd.f32 0.0, %v483
  %485 = vdwg.mxu0
  %v486 = vld [vmem:[%s5] sm:$0xff]
  %v487 = vld [vmem:[%s6] sm:$0xff]
  %v488 = vadd.f32 %v315, %v317
  %v489 = vadd.f32 %v488, %v446
  %v490 = vadd.f32 %v489, %v448
  %491 = vadd.xlane.f32.xlu0 %v490
  %v492 = vpop.xlane.xlu0 %491
  %v493 = vrcp.pop 512.0
  %v494 = vmul.f32 %v492, %v493
  %v495 = vsub.f32 %v315, %v494
  %v496 = vsub.f32 %v317, %v494
  %v497 = vsub.f32 %v446, %v494
  %v498 = vsub.f32 %v448, %v494
  %v499 = vmul.f32 %v495, %v495
  %v500 = vmul.f32 %v496, %v496
  %v501 = vmul.f32 %v497, %v497
  %v502 = vmul.f32 %v498, %v498
  %v503 = vadd.f32 %v499, %v500
  %v504 = vadd.f32 %v503, %v501
  %v505 = vadd.f32 %v504, %v502
  %506 = vadd.xlane.f32.xlu0 %v505
  %v507 = vpop.xlane.xlu0 %506
  %v508 = vmul.f32 %v507, %v493
  %v509 = vadd.f32 %v508, 1e-05
  %v510 = vrsqrt.pop %v509
  %v511 = vmul.f32 %v486, %v510
  %v512 = vmul.f32 %v494, %v511
  %v513 = vsub.f32 %v487, %v512
  %515 = vset.pattern.permute.xlu0 0
  %516 = vperm.xlu0 %515, %v511
  %v517 = vpop.permute.xlu0 %516
  %v519 = vmul.f32 %v291, %v517
  %v520 = vmul.f32 %v293, %v517
  %v521 = vmul.f32 %v422, %v517
  %v522 = vmul.f32 %v424, %v517
  %v523 = vmul.f32 %v297, %v517
  %v524 = vmul.f32 %v299, %v517
  %v525 = vmul.f32 %v428, %v517
  %v526 = vmul.f32 %v430, %v517
  %v527 = vmul.f32 %v303, %v517
  %v528 = vmul.f32 %v305, %v517
  %v529 = vmul.f32 %v434, %v517
  %v530 = vmul.f32 %v436, %v517
  %v531 = vmul.f32 %v309, %v517
  %v532 = vmul.f32 %v311, %v517
  %v533 = vmul.f32 %v440, %v517
  %v534 = vmul.f32 %v442, %v517
  %v535 = vmul.f32 %v315, %v517
  %v536 = vmul.f32 %v317, %v517
  %v537 = vmul.f32 %v446, %v517
  %v538 = vmul.f32 %v448, %v517
  %v539 = vmul.f32 %v321, %v517
  %v540 = vmul.f32 %v323, %v517
  %v541 = vmul.f32 %v452, %v517
  %v542 = vmul.f32 %v454, %v517
  %v543 = vmul.f32 %v327, %v517
  %v544 = vmul.f32 %v329, %v517
  %v545 = vmul.f32 %v458, %v517
  %v546 = vmul.f32 %v460, %v517
  %v547 = vmul.f32 %v333, %v517
  %v548 = vmul.f32 %v335, %v517
  %v549 = vmul.f32 %v464, %v517
  %v550 = vmul.f32 %v466, %v517
  %v551 = vmul.f32 %v339, %v517
  %v552 = vmul.f32 %v341, %v517
  %v553 = vmul.f32 %v470, %v517
  %v554 = vmul.f32 %v472, %v517
  %556 = vset.pattern.permute.xlu0 0
  %557 = vperm.xlu0 %556, %v513
  %v558 = vpop.permute.xlu0 %557
  %v560 = vadd.f32 %v519, %v558
  %v561 = vadd.f32 %v520, %v558
  %v562 = vadd.f32 %v521, %v558
  %v563 = vadd.f32 %v522, %v558
  %v564 = vadd.f32 %v523, %v558
  %v565 = vadd.f32 %v524, %v558
  %v566 = vadd.f32 %v525, %v558
  %v567 = vadd.f32 %v526, %v558
  %v568 = vadd.f32 %v527, %v558
  %v569 = vadd.f32 %v528, %v558
  %v570 = vadd.f32 %v529, %v558
  %v571 = vadd.f32 %v530, %v558
  %v572 = vadd.f32 %v531, %v558
  %v573 = vadd.f32 %v532, %v558
  %v574 = vadd.f32 %v533, %v558
  %v575 = vadd.f32 %v534, %v558
  %v576 = vadd.f32 %v535, %v558
  %v577 = vadd.f32 %v536, %v558
  %v578 = vadd.f32 %v537, %v558
  %v579 = vadd.f32 %v538, %v558
  %v580 = vadd.f32 %v539, %v558
  %v581 = vadd.f32 %v540, %v558
  %v582 = vadd.f32 %v541, %v558
  %v583 = vadd.f32 %v542, %v558
  %v584 = vadd.f32 %v543, %v558
  %v585 = vadd.f32 %v544, %v558
  %v586 = vadd.f32 %v545, %v558
  %v587 = vadd.f32 %v546, %v558
  %v588 = vadd.f32 %v547, %v558
  %v589 = vadd.f32 %v548, %v558
  %v590 = vadd.f32 %v549, %v558
  %v591 = vadd.f32 %v550, %v558
  %v592 = vadd.f32 %v551, %v558
  %v593 = vadd.f32 %v552, %v558
  %v594 = vadd.f32 %v553, %v558
  %v595 = vadd.f32 %v554, %v558
  %v596 = vmax.f32 %v560, 0.0
  %v597 = vmax.f32 %v561, 0.0
  %v598 = vmax.f32 %v562, 0.0
  %v599 = vmax.f32 %v563, 0.0
  %v600 = vmax.f32 %v564, 0.0
  %v601 = vmax.f32 %v565, 0.0
  %v602 = vmax.f32 %v566, 0.0
  %v603 = vmax.f32 %v567, 0.0
  %v604 = vmax.f32 %v568, 0.0
  %v605 = vmax.f32 %v569, 0.0
  %v606 = vmax.f32 %v570, 0.0
  %v607 = vmax.f32 %v571, 0.0
  %v608 = vmax.f32 %v572, 0.0
  %v609 = vmax.f32 %v573, 0.0
  %v610 = vmax.f32 %v574, 0.0
  %v611 = vmax.f32 %v575, 0.0
  %v612 = vmax.f32 %v576, 0.0
  %v613 = vmax.f32 %v577, 0.0
  %v614 = vmax.f32 %v578, 0.0
  %v615 = vmax.f32 %v579, 0.0
  %v616 = vmax.f32 %v580, 0.0
  %v617 = vmax.f32 %v581, 0.0
  %v618 = vmax.f32 %v582, 0.0
  %v619 = vmax.f32 %v583, 0.0
  %v620 = vmax.f32 %v584, 0.0
  %v621 = vmax.f32 %v585, 0.0
  %v622 = vmax.f32 %v586, 0.0
  %v623 = vmax.f32 %v587, 0.0
  %v624 = vmax.f32 %v588, 0.0
  %v625 = vmax.f32 %v589, 0.0
  %v626 = vmax.f32 %v590, 0.0
  %v627 = vmax.f32 %v591, 0.0
  %v628 = vmax.f32 %v592, 0.0
  %v629 = vmax.f32 %v593, 0.0
  %v630 = vmax.f32 %v594, 0.0
  %v631 = vmax.f32 %v595, 0.0
  %v632 = vld [vmem:[%s2] sm:$0xff]
  %v633 = vld [vmem:[%s2 + $0x8] sm:$0xff]
  %v634 = vld [vmem:[%s2 + $0x10] sm:$0xff]
  %v635 = vld [vmem:[%s2 + $0x18] sm:$0xff]
  %v636 = vld [vmem:[%s2 + $0x20] sm:$0xff]
  %v637 = vld [vmem:[%s2 + $0x28] sm:$0xff]
  %v638 = vld [vmem:[%s2 + $0x30] sm:$0xff]
  %v639 = vld [vmem:[%s2 + $0x38] sm:$0xff]
  %v640 = vld [vmem:[%s2 + $0x40] sm:$0xff]
  %v641 = vld [vmem:[%s2 + $0x48] sm:$0xff]
  %v642 = vld [vmem:[%s2 + $0x50] sm:$0xff]
  %v643 = vld [vmem:[%s2 + $0x58] sm:$0xff]
  %v644 = vld [vmem:[%s2 + $0x60] sm:$0xff]
  %v645 = vld [vmem:[%s2 + $0x68] sm:$0xff]
  %v646 = vld [vmem:[%s2 + $0x70] sm:$0xff]
  %v647 = vld [vmem:[%s2 + $0x78] sm:$0xff]
  %v648 = vld [vmem:[%s2 + $0x80] sm:$0xff]
  %v649 = vld [vmem:[%s2 + $0x88] sm:$0xff]
  %v650 = vld [vmem:[%s2 + $0x90] sm:$0xff]
  %v651 = vld [vmem:[%s2 + $0x98] sm:$0xff]
  %v652 = vld [vmem:[%s2 + $0xa0] sm:$0xff]
  %v653 = vld [vmem:[%s2 + $0xa8] sm:$0xff]
  %v654 = vld [vmem:[%s2 + $0xb0] sm:$0xff]
  %v655 = vld [vmem:[%s2 + $0xb8] sm:$0xff]
  %v656 = vld [vmem:[%s2 + $0xc0] sm:$0xff]
  %v657 = vld [vmem:[%s2 + $0xc8] sm:$0xff]
  %v658 = vld [vmem:[%s2 + $0xd0] sm:$0xff]
  %v659 = vld [vmem:[%s2 + $0xd8] sm:$0xff]
  %v660 = vld [vmem:[%s2 + $0xe0] sm:$0xff]
  %v661 = vld [vmem:[%s2 + $0xe8] sm:$0xff]
  %v662 = vld [vmem:[%s2 + $0xf0] sm:$0xff]
  %v663 = vld [vmem:[%s2 + $0xf8] sm:$0xff]
  %v664 = vld [vmem:[%s2 + $0x100] sm:$0xff]
  %v665 = vld [vmem:[%s2 + $0x108] sm:$0xff]
  %v666 = vld [vmem:[%s2 + $0x110] sm:$0xff]
  %v667 = vld [vmem:[%s2 + $0x118] sm:$0xff]
  %v668 = vmul.f32 %v596, %v632
  %v669 = vmul.f32 %v597, %v633
  %v670 = vmul.f32 %v598, %v634
  %v671 = vmul.f32 %v599, %v635
  %v672 = vmul.f32 %v600, %v636
  %v673 = vmul.f32 %v601, %v637
  %v674 = vmul.f32 %v602, %v638
  %v675 = vmul.f32 %v603, %v639
  %v676 = vmul.f32 %v604, %v640
  %v677 = vmul.f32 %v605, %v641
  %v678 = vmul.f32 %v606, %v642
  %v679 = vmul.f32 %v607, %v643
  %v680 = vmul.f32 %v608, %v644
  %v681 = vmul.f32 %v609, %v645
  %v682 = vmul.f32 %v610, %v646
  %v683 = vmul.f32 %v611, %v647
  %v684 = vmul.f32 %v612, %v648
  %v685 = vmul.f32 %v613, %v649
  %v686 = vmul.f32 %v614, %v650
  %v687 = vmul.f32 %v615, %v651
  %v688 = vmul.f32 %v616, %v652
  %v689 = vmul.f32 %v617, %v653
  %v690 = vmul.f32 %v618, %v654
  %v691 = vmul.f32 %v619, %v655
  %v692 = vmul.f32 %v620, %v656
  %v693 = vmul.f32 %v621, %v657
  %v694 = vmul.f32 %v622, %v658
  %v695 = vmul.f32 %v623, %v659
  %v696 = vmul.f32 %v624, %v660
  %v697 = vmul.f32 %v625, %v661
  %v698 = vmul.f32 %v626, %v662
  %v699 = vmul.f32 %v627, %v663
  %v700 = vmul.f32 %v628, %v664
  %v701 = vmul.f32 %v629, %v665
  %v702 = vmul.f32 %v630, %v666
  %v703 = vmul.f32 %v631, %v667
  %v704 = vld [vmem:[%s4] sm:$0xff]
  %vm705 = vcmask 588800
  %v707 = vsel %vm705, %v704, 0
  %709 = vmatprep.subr.mxu0 %v669
  %710 = vmatpush1.msra.mxu0 %v668
  %711 = vmatprep.subr.mxu0 %v673
  %712 = vmatpush1.msra.mxu0 %v672
  %713 = vmatprep.subr.mxu0 %v677
  %714 = vmatpush1.msra.mxu0 %v676
  %715 = vmatprep.subr.mxu0 %v681
  %716 = vmatpush1.msra.mxu0 %v680
  %717 = vmatprep.subr.mxu0 %v685
  %718 = vmatpush1.msra.mxu0 %v684
  %719 = vmatprep.subr.mxu0 %v689
  %720 = vmatpush1.msra.mxu0 %v688
  %721 = vmatprep.subr.mxu0 %v693
  %722 = vmatpush1.msra.mxu0 %v692
  %723 = vmatprep.subr.mxu0 %v697
  %724 = vmatpush1.msra.mxu0 %v696
  %725 = vmatprep.subr.mxu0 %v701
  %726 = vmatpush1.msra.mxu0 %v700
  %727 = vmatprep.subr.mxu0 0.0
  %728 = vmatpush1.msra.mxu0 0.0
  %729 = vmatprep.subr.mxu0 0.0
  %730 = vmatpush1.msra.mxu0 0.0
  %731 = vmatprep.subr.mxu0 0.0
  %732 = vmatpush1.msra.mxu0 0.0
  %733 = vmatprep.subr.mxu0 0.0
  %734 = vmatpush1.msra.mxu0 0.0
  %735 = vmatprep.subr.mxu0 0.0
  %736 = vmatpush1.msra.mxu0 0.0
  %737 = vmatprep.subr.mxu0 0.0
  %738 = vmatpush1.msra.mxu0 0.0
  %739 = vmatprep.subr.mxu0 0.0
  %740 = vmatpush1.msra.mxu0 0.0
  %741 = vmatprep.subr.mxu0 0.0
  %742 = vmatpush1.msra.mxu0 0.0
  %743 = vmatprep.subr.mxu0 0.0
  %744 = vmatpush1.msra.mxu0 0.0
  %745 = vmatprep.subr.mxu0 0.0
  %746 = vmatpush1.msra.mxu0 0.0
  %747 = vmatprep.subr.mxu0 0.0
  %748 = vmatpush1.msra.mxu0 0.0
  %749 = vmatprep.subr.mxu0 0.0
  %750 = vmatpush1.msra.mxu0 0.0
  %751 = vmatprep.subr.mxu0 0.0
  %752 = vmatpush1.msra.mxu0 0.0
  %753 = vmatprep.subr.mxu0 0.0
  %754 = vmatpush1.msra.mxu0 0.0
  %755 = vmatprep.subr.mxu0 0.0
  %756 = vmatpush1.msra.mxu0 0.0
  %757 = vmatprep.subr.mxu0 0.0
  %758 = vmatpush1.msra.mxu0 0.0
  %759 = vmatprep.subr.mxu0 0.0
  %760 = vmatpush1.msra.mxu0 0.0
  %761 = vmatprep.subr.mxu0 0.0
  %762 = vmatpush1.msra.mxu0 0.0
  %763 = vmatprep.subr.mxu0 0.0
  %764 = vmatpush1.msra.mxu0 0.0
  %765 = vmatprep.subr.mxu0 0.0
  %766 = vmatpush1.msra.mxu0 0.0
  %767 = vmatprep.subr.mxu0 0.0
  %768 = vmatpush1.msra.mxu0 0.0
  %769 = vmatprep.subr.mxu0 0.0
  %770 = vmatpush1.msra.mxu0 0.0
  %771 = vmatprep.subr.mxu0 0.0
  %772 = vmatpush1.msra.mxu0 0.0
  %773 = vmatprep.mubr.f32.mxu0 0.0
  %774 = vmatmul.mubr.f32.gmra.mrb[0].mxu0 %v707
  %v775 = vpop.f32.mrb[0].mxu0
  %v776 = vadd.f32 0.0, %v775
  %v777 = vpop.f32.mrb[0].mxu0
  %v778 = vadd.f32 0.0, %v777
  %779 = vdwg.mxu0
  %780 = vmatprep.subr.mxu0 %v671
  %781 = vmatpush1.msra.mxu0 %v670
  %782 = vmatprep.subr.mxu0 %v675
  %783 = vmatpush1.msra.mxu0 %v674
  %784 = vmatprep.subr.mxu0 %v679
  %785 = vmatpush1.msra.mxu0 %v678
  %786 = vmatprep.subr.mxu0 %v683
  %787 = vmatpush1.msra.mxu0 %v682
  %788 = vmatprep.subr.mxu0 %v687
  %789 = vmatpush1.msra.mxu0 %v686
  %790 = vmatprep.subr.mxu0 %v691
  %791 = vmatpush1.msra.mxu0 %v690
  %792 = vmatprep.subr.mxu0 %v695
  %793 = vmatpush1.msra.mxu0 %v694
  %794 = vmatprep.subr.mxu0 %v699
  %795 = vmatpush1.msra.mxu0 %v698
  %796 = vmatprep.subr.mxu0 %v703
  %797 = vmatpush1.msra.mxu0 %v702
  %798 = vmatprep.subr.mxu0 0.0
  %799 = vmatpush1.msra.mxu0 0.0
  %800 = vmatprep.subr.mxu0 0.0
  %801 = vmatpush1.msra.mxu0 0.0
  %802 = vmatprep.subr.mxu0 0.0
  %803 = vmatpush1.msra.mxu0 0.0
  %804 = vmatprep.subr.mxu0 0.0
  %805 = vmatpush1.msra.mxu0 0.0
  %806 = vmatprep.subr.mxu0 0.0
  %807 = vmatpush1.msra.mxu0 0.0
  %808 = vmatprep.subr.mxu0 0.0
  %809 = vmatpush1.msra.mxu0 0.0
  %810 = vmatprep.subr.mxu0 0.0
  %811 = vmatpush1.msra.mxu0 0.0
  %812 = vmatprep.subr.mxu0 0.0
  %813 = vmatpush1.msra.mxu0 0.0
  %814 = vmatprep.subr.mxu0 0.0
  %815 = vmatpush1.msra.mxu0 0.0
  %816 = vmatprep.subr.mxu0 0.0
  %817 = vmatpush1.msra.mxu0 0.0
  %818 = vmatprep.subr.mxu0 0.0
  %819 = vmatpush1.msra.mxu0 0.0
  %820 = vmatprep.subr.mxu0 0.0
  %821 = vmatpush1.msra.mxu0 0.0
  %822 = vmatprep.subr.mxu0 0.0
  %823 = vmatpush1.msra.mxu0 0.0
  %824 = vmatprep.subr.mxu0 0.0
  %825 = vmatpush1.msra.mxu0 0.0
  %826 = vmatprep.subr.mxu0 0.0
  %827 = vmatpush1.msra.mxu0 0.0
  %828 = vmatprep.subr.mxu0 0.0
  %829 = vmatpush1.msra.mxu0 0.0
  %830 = vmatprep.subr.mxu0 0.0
  %831 = vmatpush1.msra.mxu0 0.0
  %832 = vmatprep.subr.mxu0 0.0
  %833 = vmatpush1.msra.mxu0 0.0
  %834 = vmatprep.subr.mxu0 0.0
  %835 = vmatpush1.msra.mxu0 0.0
  %836 = vmatprep.subr.mxu0 0.0
  %837 = vmatpush1.msra.mxu0 0.0
  %838 = vmatprep.subr.mxu0 0.0
  %839 = vmatpush1.msra.mxu0 0.0
  %840 = vmatprep.subr.mxu0 0.0
  %841 = vmatpush1.msra.mxu0 0.0
  %842 = vmatprep.subr.mxu0 0.0
  %843 = vmatpush1.msra.mxu0 0.0
  %844 = vmatprep.mubr.f32.mxu0 0.0
  %845 = vmatmul.mubr.f32.gmra.mrb[0].mxu0 %v707
  %v846 = vpop.f32.mrb[0].mxu0
  %v847 = vadd.f32 0.0, %v846
  %v848 = vpop.f32.mrb[0].mxu0
  %v849 = vadd.f32 0.0, %v848
  %850 = vdwg.mxu0
  %v851 = vld [vmem:[%s5 + $0x8] sm:$0xff]
  %v852 = vld [vmem:[%s6 + $0x8] sm:$0xff]
  %v853 = vadd.f32 %v776, %v778
  %v854 = vadd.f32 %v853, %v847
  %v855 = vadd.f32 %v854, %v849
  %856 = vadd.xlane.f32.xlu0 %v855
  %v857 = vpop.xlane.xlu0 %856
  %v858 = vmul.f32 %v857, %v493
  %v859 = vsub.f32 %v776, %v858
  %v860 = vsub.f32 %v778, %v858
  %v861 = vsub.f32 %v847, %v858
  %v862 = vsub.f32 %v849, %v858
  %v863 = vmul.f32 %v859, %v859
  %v864 = vmul.f32 %v860, %v860
  %v865 = vmul.f32 %v861, %v861
  %v866 = vmul.f32 %v862, %v862
  %v867 = vadd.f32 %v863, %v864
  %v868 = vadd.f32 %v867, %v865
  %v869 = vadd.f32 %v868, %v866
  %870 = vadd.xlane.f32.xlu0 %v869
  %v871 = vpop.xlane.xlu0 %870
  %v872 = vmul.f32 %v871, %v493
  %v873 = vadd.f32 %v872, 1e-05
  %v874 = vrsqrt.pop %v873
  %v875 = vmul.f32 %v851, %v874
  %877 = vset.pattern.permute.xlu0 0
  %878 = vperm.xlu0 %877, %v875
  %v879 = vpop.permute.xlu0 %878
  %v881 = vmul.f32 %v859, %v879
  %v882 = vmul.f32 %v860, %v879
  %v883 = vmul.f32 %v861, %v879
  %v884 = vmul.f32 %v862, %v879
  %886 = vset.pattern.permute.xlu0 0
  %887 = vperm.xlu0 %886, %v852
  %v888 = vpop.permute.xlu0 %887
  %v890 = vadd.f32 %v881, %v888
  %v891 = vadd.f32 %v882, %v888
  %v892 = vadd.f32 %v883, %v888
  %v893 = vadd.f32 %v884, %v888
  %v894 = vmax.f32 %v890, 0.0
  %v895 = vmax.f32 %v891, 0.0
  %v896 = vmax.f32 %v892, 0.0
  %v897 = vmax.f32 %v893, 0.0
  %v898 = vld [vmem:[%s7] sm:$0xf]
  %vm899 = vcmask 64512
  %v901 = vsel %vm899, %v898, 0
  %903 = vmatprep.subr.mxu0 %v895
  %904 = vmatpush1.msra.mxu0 %v894
  %905 = vmatprep.subr.mxu0 0.0
  %906 = vmatpush1.msra.mxu0 0.0
  %907 = vmatprep.subr.mxu0 0.0
  %908 = vmatpush1.msra.mxu0 0.0
  %909 = vmatprep.subr.mxu0 0.0
  %910 = vmatpush1.msra.mxu0 0.0
  %911 = vmatprep.subr.mxu0 0.0
  %912 = vmatpush1.msra.mxu0 0.0
  %913 = vmatprep.subr.mxu0 0.0
  %914 = vmatpush1.msra.mxu0 0.0
  %915 = vmatprep.subr.mxu0 0.0
  %916 = vmatpush1.msra.mxu0 0.0
  %917 = vmatprep.subr.mxu0 0.0
  %918 = vmatpush1.msra.mxu0 0.0
  %919 = vmatprep.subr.mxu0 0.0
  %920 = vmatpush1.msra.mxu0 0.0
  %921 = vmatprep.subr.mxu0 0.0
  %922 = vmatpush1.msra.mxu0 0.0
  %923 = vmatprep.subr.mxu0 0.0
  %924 = vmatpush1.msra.mxu0 0.0
  %925 = vmatprep.subr.mxu0 0.0
  %926 = vmatpush1.msra.mxu0 0.0
  %927 = vmatprep.subr.mxu0 0.0
  %928 = vmatpush1.msra.mxu0 0.0
  %929 = vmatprep.subr.mxu0 0.0
  %930 = vmatpush1.msra.mxu0 0.0
  %931 = vmatprep.subr.mxu0 0.0
  %932 = vmatpush1.msra.mxu0 0.0
  %933 = vmatprep.subr.mxu0 0.0
  %934 = vmatpush1.msra.mxu0 0.0
  %935 = vmatprep.subr.mxu0 0.0
  %936 = vmatpush1.msra.mxu0 0.0
  %937 = vmatprep.subr.mxu0 0.0
  %938 = vmatpush1.msra.mxu0 0.0
  %939 = vmatprep.subr.mxu0 0.0
  %940 = vmatpush1.msra.mxu0 0.0
  %941 = vmatprep.subr.mxu0 0.0
  %942 = vmatpush1.msra.mxu0 0.0
  %943 = vmatprep.subr.mxu0 0.0
  %944 = vmatpush1.msra.mxu0 0.0
  %945 = vmatprep.subr.mxu0 0.0
  %946 = vmatpush1.msra.mxu0 0.0
  %947 = vmatprep.subr.mxu0 0.0
  %948 = vmatpush1.msra.mxu0 0.0
  %949 = vmatprep.subr.mxu0 0.0
  %950 = vmatpush1.msra.mxu0 0.0
  %951 = vmatprep.subr.mxu0 0.0
  %952 = vmatpush1.msra.mxu0 0.0
  %953 = vmatprep.subr.mxu0 0.0
  %954 = vmatpush1.msra.mxu0 0.0
  %955 = vmatprep.subr.mxu0 0.0
  %956 = vmatpush1.msra.mxu0 0.0
  %957 = vmatprep.subr.mxu0 0.0
  %958 = vmatpush1.msra.mxu0 0.0
  %959 = vmatprep.subr.mxu0 0.0
  %960 = vmatpush1.msra.mxu0 0.0
  %961 = vmatprep.subr.mxu0 0.0
  %962 = vmatpush1.msra.mxu0 0.0
  %963 = vmatprep.subr.mxu0 0.0
  %964 = vmatpush1.msra.mxu0 0.0
  %965 = vmatprep.subr.mxu0 0.0
  %966 = vmatpush1.msra.mxu0 0.0
  %967 = vmatprep.mubr.f32.mxu0 0.0
  %968 = vmatmul.mubr.f32.gmra.mrb[0].mxu0 %v901
  %v969 = vpop.f32.mrb[0].mxu0
  %v970 = vadd.f32 0.0, %v969
  %v971 = vpop.f32.mrb[0].mxu0
  %v972 = vadd.f32 0.0, %v971
  %973 = vdwg.mxu0
  %974 = vmatprep.subr.mxu0 %v897
  %975 = vmatpush1.msra.mxu0 %v896
  %976 = vmatprep.subr.mxu0 0.0
  %977 = vmatpush1.msra.mxu0 0.0
  %978 = vmatprep.subr.mxu0 0.0
  %979 = vmatpush1.msra.mxu0 0.0
  %980 = vmatprep.subr.mxu0 0.0
  %981 = vmatpush1.msra.mxu0 0.0
  %982 = vmatprep.subr.mxu0 0.0
  %983 = vmatpush1.msra.mxu0 0.0
  %984 = vmatprep.subr.mxu0 0.0
  %985 = vmatpush1.msra.mxu0 0.0
  %986 = vmatprep.subr.mxu0 0.0
  %987 = vmatpush1.msra.mxu0 0.0
  %988 = vmatprep.subr.mxu0 0.0
  %989 = vmatpush1.msra.mxu0 0.0
  %990 = vmatprep.subr.mxu0 0.0
  %991 = vmatpush1.msra.mxu0 0.0
  %992 = vmatprep.subr.mxu0 0.0
  %993 = vmatpush1.msra.mxu0 0.0
  %994 = vmatprep.subr.mxu0 0.0
  %995 = vmatpush1.msra.mxu0 0.0
  %996 = vmatprep.subr.mxu0 0.0
  %997 = vmatpush1.msra.mxu0 0.0
  %998 = vmatprep.subr.mxu0 0.0
  %999 = vmatpush1.msra.mxu0 0.0
  %1000 = vmatprep.subr.mxu0 0.0
  %1001 = vmatpush1.msra.mxu0 0.0
  %1002 = vmatprep.subr.mxu0 0.0
  %1003 = vmatpush1.msra.mxu0 0.0
  %1004 = vmatprep.subr.mxu0 0.0
  %1005 = vmatpush1.msra.mxu0 0.0
  %1006 = vmatprep.subr.mxu0 0.0
  %1007 = vmatpush1.msra.mxu0 0.0
  %1008 = vmatprep.subr.mxu0 0.0
  %1009 = vmatpush1.msra.mxu0 0.0
  %1010 = vmatprep.subr.mxu0 0.0
  %1011 = vmatpush1.msra.mxu0 0.0
  %1012 = vmatprep.subr.mxu0 0.0
  %1013 = vmatpush1.msra.mxu0 0.0
  %1014 = vmatprep.subr.mxu0 0.0
  %1015 = vmatpush1.msra.mxu0 0.0
  %1016 = vmatprep.subr.mxu0 0.0
  %1017 = vmatpush1.msra.mxu0 0.0
  %1018 = vmatprep.subr.mxu0 0.0
  %1019 = vmatpush1.msra.mxu0 0.0
  %1020 = vmatprep.subr.mxu0 0.0
  %1021 = vmatpush1.msra.mxu0 0.0
  %1022 = vmatprep.subr.mxu0 0.0
  %1023 = vmatpush1.msra.mxu0 0.0
  %1024 = vmatprep.subr.mxu0 0.0
  %1025 = vmatpush1.msra.mxu0 0.0
  %1026 = vmatprep.subr.mxu0 0.0
  %1027 = vmatpush1.msra.mxu0 0.0
  %1028 = vmatprep.subr.mxu0 0.0
  %1029 = vmatpush1.msra.mxu0 0.0
  %1030 = vmatprep.subr.mxu0 0.0
  %1031 = vmatpush1.msra.mxu0 0.0
  %1032 = vmatprep.subr.mxu0 0.0
  %1033 = vmatpush1.msra.mxu0 0.0
  %1034 = vmatprep.subr.mxu0 0.0
  %1035 = vmatpush1.msra.mxu0 0.0
  %1036 = vmatprep.subr.mxu0 0.0
  %1037 = vmatpush1.msra.mxu0 0.0
  %1038 = vmatprep.mubr.f32.mxu0 0.0
  %1039 = vmatmul.mubr.f32.gmra.mrb[0].mxu0 %v901
  %v1040 = vpop.f32.mrb[0].mxu0
  %v1041 = vadd.f32 0.0, %v1040
  %v1042 = vpop.f32.mrb[0].mxu0
  %v1043 = vadd.f32 0.0, %v1042
  %1044 = vdwg.mxu0
  %v1049 = vcombine.low %v970, %v972
  %v1050 = vcombine.low %v1041, %v1043
  %v1053 = vadd.f32 %v53, %v1049
  %v1054 = vadd.f32 %v54, %v1050
  %v1055 = vld [vmem:[%s8] sm:$0xf]
  %1057 = vset.pattern.permute.xlu0 0
  %1058 = vperm.xlu0 %1057, %v1055
  %v1059 = vpop.permute.xlu0 %1058
  %v1061 = vunpack.c.l.s4 839922192
  %v1062 = vunpack.c.0.s8 %v1061
  %v1063 = vlaneseq
  %v1064 = vshrl.u32 %v1063, 7
  %v1065 = vsub.s32 %v1062, %v1064
  %v1066 = vrot.slane %v1059, %v1065
  %v1068 = vadd.f32 %v1053, %v1066
  %v1069 = vadd.f32 %v1054, %v1066
  %v1070 = vmax.f32 %v1068, 0.0
  %v1071 = vmax.f32 %v1069, 0.0
  %v1072 = vld [vmem:[%s5 + $0x10] sm:$0xff]
  %v1073 = vld [vmem:[%s6 + $0x10] sm:$0xff]
  %v1074 = vadd.f32 %v345, %v347
  %v1075 = vadd.f32 %v1074, %v476
  %v1076 = vadd.f32 %v1075, %v478
  %1077 = vadd.xlane.f32.xlu0 %v1076
  %v1078 = vpop.xlane.xlu0 %1077
  %v1079 = vmul.f32 %v1078, %v493
  %v1080 = vsub.f32 %v345, %v1079
  %v1081 = vsub.f32 %v347, %v1079
  %v1082 = vsub.f32 %v476, %v1079
  %v1083 = vsub.f32 %v478, %v1079
  %v1084 = vmul.f32 %v1080, %v1080
  %v1085 = vmul.f32 %v1081, %v1081
  %v1086 = vmul.f32 %v1082, %v1082
  %v1087 = vmul.f32 %v1083, %v1083
  %v1088 = vadd.f32 %v1084, %v1085
  %v1089 = vadd.f32 %v1088, %v1086
  %v1090 = vadd.f32 %v1089, %v1087
  %1091 = vadd.xlane.f32.xlu0 %v1090
  %v1092 = vpop.xlane.xlu0 %1091
  %v1093 = vmul.f32 %v1092, %v493
  %v1094 = vadd.f32 %v1093, 1e-05
  %v1095 = vrsqrt.pop %v1094
  %v1096 = vmul.f32 %v1072, %v1095
  %1098 = vset.pattern.permute.xlu0 0
  %1099 = vperm.xlu0 %1098, %v1096
  %v1100 = vpop.permute.xlu0 %1099
  %v1102 = vmul.f32 %v1080, %v1100
  %v1103 = vmul.f32 %v1081, %v1100
  %v1104 = vmul.f32 %v1082, %v1100
  %v1105 = vmul.f32 %v1083, %v1100
  %1107 = vset.pattern.permute.xlu0 0
  %1108 = vperm.xlu0 %1107, %v1073
  %v1109 = vpop.permute.xlu0 %1108
  %v1111 = vadd.f32 %v1102, %v1109
  %v1112 = vadd.f32 %v1103, %v1109
  %v1113 = vadd.f32 %v1104, %v1109
  %v1114 = vadd.f32 %v1105, %v1109
  %v1115 = vmax.f32 %v1111, 0.0
  %v1116 = vmax.f32 %v1112, 0.0
  %v1117 = vmax.f32 %v1113, 0.0
  %v1118 = vmax.f32 %v1114, 0.0
  %v1119 = vld [vmem:[%s10] sm:$0xf]
  %v1121 = vsel %vm899, %v1119, 0
  %1123 = vmatprep.subr.mxu0 %v1116
  %1124 = vmatpush1.msra.mxu0 %v1115
  %1125 = vmatprep.subr.mxu0 0.0
  %1126 = vmatpush1.msra.mxu0 0.0
  %1127 = vmatprep.subr.mxu0 0.0
  %1128 = vmatpush1.msra.mxu0 0.0
  %1129 = vmatprep.subr.mxu0 0.0
  %1130 = vmatpush1.msra.mxu0 0.0
  %1131 = vmatprep.subr.mxu0 0.0
  %1132 = vmatpush1.msra.mxu0 0.0
  %1133 = vmatprep.subr.mxu0 0.0
  %1134 = vmatpush1.msra.mxu0 0.0
  %1135 = vmatprep.subr.mxu0 0.0
  %1136 = vmatpush1.msra.mxu0 0.0
  %1137 = vmatprep.subr.mxu0 0.0
  %1138 = vmatpush1.msra.mxu0 0.0
  %1139 = vmatprep.subr.mxu0 0.0
  %1140 = vmatpush1.msra.mxu0 0.0
  %1141 = vmatprep.subr.mxu0 0.0
  %1142 = vmatpush1.msra.mxu0 0.0
  %1143 = vmatprep.subr.mxu0 0.0
  %1144 = vmatpush1.msra.mxu0 0.0
  %1145 = vmatprep.subr.mxu0 0.0
  %1146 = vmatpush1.msra.mxu0 0.0
  %1147 = vmatprep.subr.mxu0 0.0
  %1148 = vmatpush1.msra.mxu0 0.0
  %1149 = vmatprep.subr.mxu0 0.0
  %1150 = vmatpush1.msra.mxu0 0.0
  %1151 = vmatprep.subr.mxu0 0.0
  %1152 = vmatpush1.msra.mxu0 0.0
  %1153 = vmatprep.subr.mxu0 0.0
  %1154 = vmatpush1.msra.mxu0 0.0
  %1155 = vmatprep.subr.mxu0 0.0
  %1156 = vmatpush1.msra.mxu0 0.0
  %1157 = vmatprep.subr.mxu0 0.0
  %1158 = vmatpush1.msra.mxu0 0.0
  %1159 = vmatprep.subr.mxu0 0.0
  %1160 = vmatpush1.msra.mxu0 0.0
  %1161 = vmatprep.subr.mxu0 0.0
  %1162 = vmatpush1.msra.mxu0 0.0
  %1163 = vmatprep.subr.mxu0 0.0
  %1164 = vmatpush1.msra.mxu0 0.0
  %1165 = vmatprep.subr.mxu0 0.0
  %1166 = vmatpush1.msra.mxu0 0.0
  %1167 = vmatprep.subr.mxu0 0.0
  %1168 = vmatpush1.msra.mxu0 0.0
  %1169 = vmatprep.subr.mxu0 0.0
  %1170 = vmatpush1.msra.mxu0 0.0
  %1171 = vmatprep.subr.mxu0 0.0
  %1172 = vmatpush1.msra.mxu0 0.0
  %1173 = vmatprep.subr.mxu0 0.0
  %1174 = vmatpush1.msra.mxu0 0.0
  %1175 = vmatprep.subr.mxu0 0.0
  %1176 = vmatpush1.msra.mxu0 0.0
  %1177 = vmatprep.subr.mxu0 0.0
  %1178 = vmatpush1.msra.mxu0 0.0
  %1179 = vmatprep.subr.mxu0 0.0
  %1180 = vmatpush1.msra.mxu0 0.0
  %1181 = vmatprep.subr.mxu0 0.0
  %1182 = vmatpush1.msra.mxu0 0.0
  %1183 = vmatprep.subr.mxu0 0.0
  %1184 = vmatpush1.msra.mxu0 0.0
  %1185 = vmatprep.subr.mxu0 0.0
  %1186 = vmatpush1.msra.mxu0 0.0
  %1187 = vmatprep.mubr.f32.mxu0 0.0
  %1188 = vmatmul.mubr.f32.gmra.mrb[0].mxu0 %v1121
  %v1189 = vpop.f32.mrb[0].mxu0
  %v1190 = vadd.f32 0.0, %v1189
  %v1191 = vpop.f32.mrb[0].mxu0
  %v1192 = vadd.f32 0.0, %v1191
  %1193 = vdwg.mxu0
  %1194 = vmatprep.subr.mxu0 %v1118
  %1195 = vmatpush1.msra.mxu0 %v1117
  %1196 = vmatprep.subr.mxu0 0.0
  %1197 = vmatpush1.msra.mxu0 0.0
  %1198 = vmatprep.subr.mxu0 0.0
  %1199 = vmatpush1.msra.mxu0 0.0
  %1200 = vmatprep.subr.mxu0 0.0
  %1201 = vmatpush1.msra.mxu0 0.0
  %1202 = vmatprep.subr.mxu0 0.0
  %1203 = vmatpush1.msra.mxu0 0.0
  %1204 = vmatprep.subr.mxu0 0.0
  %1205 = vmatpush1.msra.mxu0 0.0
  %1206 = vmatprep.subr.mxu0 0.0
  %1207 = vmatpush1.msra.mxu0 0.0
  %1208 = vmatprep.subr.mxu0 0.0
  %1209 = vmatpush1.msra.mxu0 0.0
  %1210 = vmatprep.subr.mxu0 0.0
  %1211 = vmatpush1.msra.mxu0 0.0
  %1212 = vmatprep.subr.mxu0 0.0
  %1213 = vmatpush1.msra.mxu0 0.0
  %1214 = vmatprep.subr.mxu0 0.0
  %1215 = vmatpush1.msra.mxu0 0.0
  %1216 = vmatprep.subr.mxu0 0.0
  %1217 = vmatpush1.msra.mxu0 0.0
  %1218 = vmatprep.subr.mxu0 0.0
  %1219 = vmatpush1.msra.mxu0 0.0
  %1220 = vmatprep.subr.mxu0 0.0
  %1221 = vmatpush1.msra.mxu0 0.0
  %1222 = vmatprep.subr.mxu0 0.0
  %1223 = vmatpush1.msra.mxu0 0.0
  %1224 = vmatprep.subr.mxu0 0.0
  %1225 = vmatpush1.msra.mxu0 0.0
  %1226 = vmatprep.subr.mxu0 0.0
  %1227 = vmatpush1.msra.mxu0 0.0
  %1228 = vmatprep.subr.mxu0 0.0
  %1229 = vmatpush1.msra.mxu0 0.0
  %1230 = vmatprep.subr.mxu0 0.0
  %1231 = vmatpush1.msra.mxu0 0.0
  %1232 = vmatprep.subr.mxu0 0.0
  %1233 = vmatpush1.msra.mxu0 0.0
  %1234 = vmatprep.subr.mxu0 0.0
  %1235 = vmatpush1.msra.mxu0 0.0
  %1236 = vmatprep.subr.mxu0 0.0
  %1237 = vmatpush1.msra.mxu0 0.0
  %1238 = vmatprep.subr.mxu0 0.0
  %1239 = vmatpush1.msra.mxu0 0.0
  %1240 = vmatprep.subr.mxu0 0.0
  %1241 = vmatpush1.msra.mxu0 0.0
  %1242 = vmatprep.subr.mxu0 0.0
  %1243 = vmatpush1.msra.mxu0 0.0
  %1244 = vmatprep.subr.mxu0 0.0
  %1245 = vmatpush1.msra.mxu0 0.0
  %1246 = vmatprep.subr.mxu0 0.0
  %1247 = vmatpush1.msra.mxu0 0.0
  %1248 = vmatprep.subr.mxu0 0.0
  %1249 = vmatpush1.msra.mxu0 0.0
  %1250 = vmatprep.subr.mxu0 0.0
  %1251 = vmatpush1.msra.mxu0 0.0
  %1252 = vmatprep.subr.mxu0 0.0
  %1253 = vmatpush1.msra.mxu0 0.0
  %1254 = vmatprep.subr.mxu0 0.0
  %1255 = vmatpush1.msra.mxu0 0.0
  %1256 = vmatprep.subr.mxu0 0.0
  %1257 = vmatpush1.msra.mxu0 0.0
  %1258 = vmatprep.mubr.f32.mxu0 0.0
  %1259 = vmatmul.mubr.f32.gmra.mrb[0].mxu0 %v1121
  %v1260 = vpop.f32.mrb[0].mxu0
  %v1261 = vadd.f32 0.0, %v1260
  %v1262 = vpop.f32.mrb[0].mxu0
  %v1263 = vadd.f32 0.0, %v1262
  %1264 = vdwg.mxu0
  %v1269 = vcombine.low %v1190, %v1192
  %v1270 = vcombine.low %v1261, %v1263
  %v1273 = vadd.f32 %v53, %v1269
  %v1274 = vadd.f32 %v54, %v1270
  %v1275 = vld [vmem:[%s11] sm:$0xf]
  %1277 = vset.pattern.permute.xlu0 0
  %1278 = vperm.xlu0 %1277, %v1275
  %v1279 = vpop.permute.xlu0 %1278
  %v1281 = vunpack.c.l.s4 839922192
  %v1282 = vunpack.c.0.s8 %v1281
  %v1283 = vlaneseq
  %v1284 = vshrl.u32 %v1283, 7
  %v1285 = vsub.s32 %v1282, %v1284
  %v1286 = vrot.slane %v1279, %v1285
  %v1288 = vadd.f32 %v1273, %v1286
  %v1289 = vadd.f32 %v1274, %v1286
  %v1290 = vmax.f32 %v1288, 0.0
  %v1291 = vmax.f32 %v1289, 0.0
  %v1292 = vld [vmem:[%s5 + $0x18] sm:$0xff]
  %v1293 = vld [vmem:[%s6 + $0x18] sm:$0xff]
  %v1294 = vadd.f32 %v351, %v353
  %v1295 = vadd.f32 %v1294, %v482
  %v1296 = vadd.f32 %v1295, %v484
  %1297 = vadd.xlane.f32.xlu0 %v1296
  %v1298 = vpop.xlane.xlu0 %1297
  %v1299 = vmul.f32 %v1298, %v493
  %v1300 = vsub.f32 %v351, %v1299
  %v1301 = vsub.f32 %v353, %v1299
  %v1302 = vsub.f32 %v482, %v1299
  %v1303 = vsub.f32 %v484, %v1299
  %v1304 = vmul.f32 %v1300, %v1300
  %v1305 = vmul.f32 %v1301, %v1301
  %v1306 = vmul.f32 %v1302, %v1302
  %v1307 = vmul.f32 %v1303, %v1303
  %v1308 = vadd.f32 %v1304, %v1305
  %v1309 = vadd.f32 %v1308, %v1306
  %v1310 = vadd.f32 %v1309, %v1307
  %1311 = vadd.xlane.f32.xlu0 %v1310
  %v1312 = vpop.xlane.xlu0 %1311
  %v1313 = vmul.f32 %v1312, %v493
  %v1314 = vadd.f32 %v1313, 1e-05
  %v1315 = vrsqrt.pop %v1314
  %v1316 = vmul.f32 %v1292, %v1315
  %1318 = vset.pattern.permute.xlu0 0
  %1319 = vperm.xlu0 %1318, %v1316
  %v1320 = vpop.permute.xlu0 %1319
  %v1322 = vmul.f32 %v1300, %v1320
  %v1323 = vmul.f32 %v1301, %v1320
  %v1324 = vmul.f32 %v1302, %v1320
  %v1325 = vmul.f32 %v1303, %v1320
  %1327 = vset.pattern.permute.xlu0 0
  %1328 = vperm.xlu0 %1327, %v1293
  %v1329 = vpop.permute.xlu0 %1328
  %v1331 = vadd.f32 %v1322, %v1329
  %v1332 = vadd.f32 %v1323, %v1329
  %v1333 = vadd.f32 %v1324, %v1329
  %v1334 = vadd.f32 %v1325, %v1329
  %v1335 = vmax.f32 %v1331, 0.0
  %v1336 = vmax.f32 %v1332, 0.0
  %v1337 = vmax.f32 %v1333, 0.0
  %v1338 = vmax.f32 %v1334, 0.0
  %1339 = vmatprep.subr.mxu0 %v1336
  %1340 = vmatpush1.msra.mxu0 %v1335
  %1341 = vmatprep.subr.mxu0 0.0
  %1342 = vmatpush1.msra.mxu0 0.0
  %1343 = vmatprep.subr.mxu0 0.0
  %1344 = vmatpush1.msra.mxu0 0.0
  %1345 = vmatprep.subr.mxu0 0.0
  %1346 = vmatpush1.msra.mxu0 0.0
  %1347 = vmatprep.subr.mxu0 0.0
  %1348 = vmatpush1.msra.mxu0 0.0
  %1349 = vmatprep.subr.mxu0 0.0
  %1350 = vmatpush1.msra.mxu0 0.0
  %1351 = vmatprep.subr.mxu0 0.0
  %1352 = vmatpush1.msra.mxu0 0.0
  %1353 = vmatprep.subr.mxu0 0.0
  %1354 = vmatpush1.msra.mxu0 0.0
  %1355 = vmatprep.subr.mxu0 0.0
  %1356 = vmatpush1.msra.mxu0 0.0
  %1357 = vmatprep.subr.mxu0 0.0
  %1358 = vmatpush1.msra.mxu0 0.0
  %1359 = vmatprep.subr.mxu0 0.0
  %1360 = vmatpush1.msra.mxu0 0.0
  %1361 = vmatprep.subr.mxu0 0.0
  %1362 = vmatpush1.msra.mxu0 0.0
  %1363 = vmatprep.subr.mxu0 0.0
  %1364 = vmatpush1.msra.mxu0 0.0
  %1365 = vmatprep.subr.mxu0 0.0
  %1366 = vmatpush1.msra.mxu0 0.0
  %1367 = vmatprep.subr.mxu0 0.0
  %1368 = vmatpush1.msra.mxu0 0.0
  %1369 = vmatprep.subr.mxu0 0.0
  %1370 = vmatpush1.msra.mxu0 0.0
  %1371 = vmatprep.subr.mxu0 0.0
  %1372 = vmatpush1.msra.mxu0 0.0
  %1373 = vmatprep.subr.mxu0 0.0
  %1374 = vmatpush1.msra.mxu0 0.0
  %1375 = vmatprep.subr.mxu0 0.0
  %1376 = vmatpush1.msra.mxu0 0.0
  %1377 = vmatprep.subr.mxu0 0.0
  %1378 = vmatpush1.msra.mxu0 0.0
  %1379 = vmatprep.subr.mxu0 0.0
  %1380 = vmatpush1.msra.mxu0 0.0
  %1381 = vmatprep.subr.mxu0 0.0
  %1382 = vmatpush1.msra.mxu0 0.0
  %1383 = vmatprep.subr.mxu0 0.0
  %1384 = vmatpush1.msra.mxu0 0.0
  %1385 = vmatprep.subr.mxu0 0.0
  %1386 = vmatpush1.msra.mxu0 0.0
  %1387 = vmatprep.subr.mxu0 0.0
  %1388 = vmatpush1.msra.mxu0 0.0
  %1389 = vmatprep.subr.mxu0 0.0
  %1390 = vmatpush1.msra.mxu0 0.0
  %1391 = vmatprep.subr.mxu0 0.0
  %1392 = vmatpush1.msra.mxu0 0.0
  %1393 = vmatprep.subr.mxu0 0.0
  %1394 = vmatpush1.msra.mxu0 0.0
  %1395 = vmatprep.subr.mxu0 0.0
  %1396 = vmatpush1.msra.mxu0 0.0
  %1397 = vmatprep.subr.mxu0 0.0
  %1398 = vmatpush1.msra.mxu0 0.0
  %1399 = vmatprep.subr.mxu0 0.0
  %1400 = vmatpush1.msra.mxu0 0.0
  %1401 = vmatprep.subr.mxu0 0.0
  %1402 = vmatpush1.msra.mxu0 0.0
  %1403 = vmatprep.mubr.f32.mxu0 0.0
  %1404 = vmatmul.mubr.f32.gmra.mrb[0].mxu0 %v901
  %v1405 = vpop.f32.mrb[0].mxu0
  %v1406 = vadd.f32 0.0, %v1405
  %v1407 = vpop.f32.mrb[0].mxu0
  %v1408 = vadd.f32 0.0, %v1407
  %1409 = vdwg.mxu0
  %1410 = vmatprep.subr.mxu0 %v1338
  %1411 = vmatpush1.msra.mxu0 %v1337
  %1412 = vmatprep.subr.mxu0 0.0
  %1413 = vmatpush1.msra.mxu0 0.0
  %1414 = vmatprep.subr.mxu0 0.0
  %1415 = vmatpush1.msra.mxu0 0.0
  %1416 = vmatprep.subr.mxu0 0.0
  %1417 = vmatpush1.msra.mxu0 0.0
  %1418 = vmatprep.subr.mxu0 0.0
  %1419 = vmatpush1.msra.mxu0 0.0
  %1420 = vmatprep.subr.mxu0 0.0
  %1421 = vmatpush1.msra.mxu0 0.0
  %1422 = vmatprep.subr.mxu0 0.0
  %1423 = vmatpush1.msra.mxu0 0.0
  %1424 = vmatprep.subr.mxu0 0.0
  %1425 = vmatpush1.msra.mxu0 0.0
  %1426 = vmatprep.subr.mxu0 0.0
  %1427 = vmatpush1.msra.mxu0 0.0
  %1428 = vmatprep.subr.mxu0 0.0
  %1429 = vmatpush1.msra.mxu0 0.0
  %1430 = vmatprep.subr.mxu0 0.0
  %1431 = vmatpush1.msra.mxu0 0.0
  %1432 = vmatprep.subr.mxu0 0.0
  %1433 = vmatpush1.msra.mxu0 0.0
  %1434 = vmatprep.subr.mxu0 0.0
  %1435 = vmatpush1.msra.mxu0 0.0
  %1436 = vmatprep.subr.mxu0 0.0
  %1437 = vmatpush1.msra.mxu0 0.0
  %1438 = vmatprep.subr.mxu0 0.0
  %1439 = vmatpush1.msra.mxu0 0.0
  %1440 = vmatprep.subr.mxu0 0.0
  %1441 = vmatpush1.msra.mxu0 0.0
  %1442 = vmatprep.subr.mxu0 0.0
  %1443 = vmatpush1.msra.mxu0 0.0
  %1444 = vmatprep.subr.mxu0 0.0
  %1445 = vmatpush1.msra.mxu0 0.0
  %1446 = vmatprep.subr.mxu0 0.0
  %1447 = vmatpush1.msra.mxu0 0.0
  %1448 = vmatprep.subr.mxu0 0.0
  %1449 = vmatpush1.msra.mxu0 0.0
  %1450 = vmatprep.subr.mxu0 0.0
  %1451 = vmatpush1.msra.mxu0 0.0
  %1452 = vmatprep.subr.mxu0 0.0
  %1453 = vmatpush1.msra.mxu0 0.0
  %1454 = vmatprep.subr.mxu0 0.0
  %1455 = vmatpush1.msra.mxu0 0.0
  %1456 = vmatprep.subr.mxu0 0.0
  %1457 = vmatpush1.msra.mxu0 0.0
  %1458 = vmatprep.subr.mxu0 0.0
  %1459 = vmatpush1.msra.mxu0 0.0
  %1460 = vmatprep.subr.mxu0 0.0
  %1461 = vmatpush1.msra.mxu0 0.0
  %1462 = vmatprep.subr.mxu0 0.0
  %1463 = vmatpush1.msra.mxu0 0.0
  %1464 = vmatprep.subr.mxu0 0.0
  %1465 = vmatpush1.msra.mxu0 0.0
  %1466 = vmatprep.subr.mxu0 0.0
  %1467 = vmatpush1.msra.mxu0 0.0
  %1468 = vmatprep.subr.mxu0 0.0
  %1469 = vmatpush1.msra.mxu0 0.0
  %1470 = vmatprep.subr.mxu0 0.0
  %1471 = vmatpush1.msra.mxu0 0.0
  %1472 = vmatprep.subr.mxu0 0.0
  %1473 = vmatpush1.msra.mxu0 0.0
  %1474 = vmatprep.mubr.f32.mxu0 0.0
  %1475 = vmatmul.mubr.f32.gmra.mrb[0].mxu0 %v901
  %v1476 = vpop.f32.mrb[0].mxu0
  %v1477 = vadd.f32 0.0, %v1476
  %v1478 = vpop.f32.mrb[0].mxu0
  %v1479 = vadd.f32 0.0, %v1478
  %1480 = vdwg.mxu0
  %v1485 = vcombine.low %v1406, %v1408
  %v1486 = vcombine.low %v1477, %v1479
  %v1489 = vadd.f32 %v53, %v1485
  %v1490 = vadd.f32 %v54, %v1486
  %v1491 = vadd.f32 %v1489, %v1066
  %v1492 = vadd.f32 %v1490, %v1066
  %v1493 = vmax.f32 %v1491, 0.0
  %v1494 = vmax.f32 %v1492, 0.0
  %v1495 = vld [vmem:[%s12] sm:$0xf]
  %v1496 = vld [vmem:[%s13] sm:$0xf]
  %1498 = vset.pattern.permute.xlu0 0
  %1499 = vperm.xlu0 %1498, %v1496
  %v1500 = vpop.permute.xlu0 %1499
  %v1504 = vcombine.high %v53, %v53
  %v1505 = vcombine.high %v54, %v54
  %vm1506 = vcmask 31744
  %v1508 = vsel %vm1506, %v1495, 0
  %v1510 = vsel %vm211, %v53, 0
  %v1512 = vsel %vm211, %v1504, 0
  %v1514 = vsel %vm211, %v54, 0
  %v1516 = vsel %vm211, %v1505, 0
  %1518 = vmatprep.subr.mxu0 %v1512
  %1519 = vmatpush1.msra.mxu0 %v1510
  %1520 = vmatprep.subr.mxu0 0.0
  %1521 = vmatpush1.msra.mxu0 0.0
  %1522 = vmatprep.subr.mxu0 0.0
  %1523 = vmatpush1.msra.mxu0 0.0
  %1524 = vmatprep.subr.mxu0 0.0
  %1525 = vmatpush1.msra.mxu0 0.0
  %1526 = vmatprep.subr.mxu0 0.0
  %1527 = vmatpush1.msra.mxu0 0.0
  %1528 = vmatprep.subr.mxu0 0.0
  %1529 = vmatpush1.msra.mxu0 0.0
  %1530 = vmatprep.subr.mxu0 0.0
  %1531 = vmatpush1.msra.mxu0 0.0
  %1532 = vmatprep.subr.mxu0 0.0
  %1533 = vmatpush1.msra.mxu0 0.0
  %1534 = vmatprep.subr.mxu0 0.0
  %1535 = vmatpush1.msra.mxu0 0.0
  %1536 = vmatprep.subr.mxu0 0.0
  %1537 = vmatpush1.msra.mxu0 0.0
  %1538 = vmatprep.subr.mxu0 0.0
  %1539 = vmatpush1.msra.mxu0 0.0
  %1540 = vmatprep.subr.mxu0 0.0
  %1541 = vmatpush1.msra.mxu0 0.0
  %1542 = vmatprep.subr.mxu0 0.0
  %1543 = vmatpush1.msra.mxu0 0.0
  %1544 = vmatprep.subr.mxu0 0.0
  %1545 = vmatpush1.msra.mxu0 0.0
  %1546 = vmatprep.subr.mxu0 0.0
  %1547 = vmatpush1.msra.mxu0 0.0
  %1548 = vmatprep.subr.mxu0 0.0
  %1549 = vmatpush1.msra.mxu0 0.0
  %1550 = vmatprep.subr.mxu0 0.0
  %1551 = vmatpush1.msra.mxu0 0.0
  %1552 = vmatprep.subr.mxu0 0.0
  %1553 = vmatpush1.msra.mxu0 0.0
  %1554 = vmatprep.subr.mxu0 0.0
  %1555 = vmatpush1.msra.mxu0 0.0
  %1556 = vmatprep.subr.mxu0 0.0
  %1557 = vmatpush1.msra.mxu0 0.0
  %1558 = vmatprep.subr.mxu0 0.0
  %1559 = vmatpush1.msra.mxu0 0.0
  %1560 = vmatprep.subr.mxu0 0.0
  %1561 = vmatpush1.msra.mxu0 0.0
  %1562 = vmatprep.subr.mxu0 0.0
  %1563 = vmatpush1.msra.mxu0 0.0
  %1564 = vmatprep.subr.mxu0 0.0
  %1565 = vmatpush1.msra.mxu0 0.0
  %1566 = vmatprep.subr.mxu0 0.0
  %1567 = vmatpush1.msra.mxu0 0.0
  %1568 = vmatprep.subr.mxu0 0.0
  %1569 = vmatpush1.msra.mxu0 0.0
  %1570 = vmatprep.subr.mxu0 0.0
  %1571 = vmatpush1.msra.mxu0 0.0
  %1572 = vmatprep.subr.mxu0 0.0
  %1573 = vmatpush1.msra.mxu0 0.0
  %1574 = vmatprep.subr.mxu0 0.0
  %1575 = vmatpush1.msra.mxu0 0.0
  %1576 = vmatprep.subr.mxu0 0.0
  %1577 = vmatpush1.msra.mxu0 0.0
  %1578 = vmatprep.subr.mxu0 0.0
  %1579 = vmatpush1.msra.mxu0 0.0
  %1580 = vmatprep.subr.mxu0 0.0
  %1581 = vmatpush1.msra.mxu0 0.0
  %1582 = vmatprep.mubr.f32.mxu0 0.0
  %1583 = vmatmul.mubr.f32.gmra.mrb[0].mxu0 %v1508
  %v1584 = vpop.f32.mrb[0].mxu0
  %v1585 = vadd.f32 %v1500, %v1584
  %v1586 = vpop.f32.mrb[0].mxu0
  %v1587 = vadd.f32 %v1500, %v1586
  %1588 = vdwg.mxu0
  %1589 = vmatprep.subr.mxu0 %v1516
  %1590 = vmatpush1.msra.mxu0 %v1514
  %1591 = vmatprep.subr.mxu0 0.0
  %1592 = vmatpush1.msra.mxu0 0.0
  %1593 = vmatprep.subr.mxu0 0.0
  %1594 = vmatpush1.msra.mxu0 0.0
  %1595 = vmatprep.subr.mxu0 0.0
  %1596 = vmatpush1.msra.mxu0 0.0
  %1597 = vmatprep.subr.mxu0 0.0
  %1598 = vmatpush1.msra.mxu0 0.0
  %1599 = vmatprep.subr.mxu0 0.0
  %1600 = vmatpush1.msra.mxu0 0.0
  %1601 = vmatprep.subr.mxu0 0.0
  %1602 = vmatpush1.msra.mxu0 0.0
  %1603 = vmatprep.subr.mxu0 0.0
  %1604 = vmatpush1.msra.mxu0 0.0
  %1605 = vmatprep.subr.mxu0 0.0
  %1606 = vmatpush1.msra.mxu0 0.0
  %1607 = vmatprep.subr.mxu0 0.0
  %1608 = vmatpush1.msra.mxu0 0.0
  %1609 = vmatprep.subr.mxu0 0.0
  %1610 = vmatpush1.msra.mxu0 0.0
  %1611 = vmatprep.subr.mxu0 0.0
  %1612 = vmatpush1.msra.mxu0 0.0
  %1613 = vmatprep.subr.mxu0 0.0
  %1614 = vmatpush1.msra.mxu0 0.0
  %1615 = vmatprep.subr.mxu0 0.0
  %1616 = vmatpush1.msra.mxu0 0.0
  %1617 = vmatprep.subr.mxu0 0.0
  %1618 = vmatpush1.msra.mxu0 0.0
  %1619 = vmatprep.subr.mxu0 0.0
  %1620 = vmatpush1.msra.mxu0 0.0
  %1621 = vmatprep.subr.mxu0 0.0
  %1622 = vmatpush1.msra.mxu0 0.0
  %1623 = vmatprep.subr.mxu0 0.0
  %1624 = vmatpush1.msra.mxu0 0.0
  %1625 = vmatprep.subr.mxu0 0.0
  %1626 = vmatpush1.msra.mxu0 0.0
  %1627 = vmatprep.subr.mxu0 0.0
  %1628 = vmatpush1.msra.mxu0 0.0
  %1629 = vmatprep.subr.mxu0 0.0
  %1630 = vmatpush1.msra.mxu0 0.0
  %1631 = vmatprep.subr.mxu0 0.0
  %1632 = vmatpush1.msra.mxu0 0.0
  %1633 = vmatprep.subr.mxu0 0.0
  %1634 = vmatpush1.msra.mxu0 0.0
  %1635 = vmatprep.subr.mxu0 0.0
  %1636 = vmatpush1.msra.mxu0 0.0
  %1637 = vmatprep.subr.mxu0 0.0
  %1638 = vmatpush1.msra.mxu0 0.0
  %1639 = vmatprep.subr.mxu0 0.0
  %1640 = vmatpush1.msra.mxu0 0.0
  %1641 = vmatprep.subr.mxu0 0.0
  %1642 = vmatpush1.msra.mxu0 0.0
  %1643 = vmatprep.subr.mxu0 0.0
  %1644 = vmatpush1.msra.mxu0 0.0
  %1645 = vmatprep.subr.mxu0 0.0
  %1646 = vmatpush1.msra.mxu0 0.0
  %1647 = vmatprep.subr.mxu0 0.0
  %1648 = vmatpush1.msra.mxu0 0.0
  %1649 = vmatprep.subr.mxu0 0.0
  %1650 = vmatpush1.msra.mxu0 0.0
  %1651 = vmatprep.subr.mxu0 0.0
  %1652 = vmatpush1.msra.mxu0 0.0
  %1653 = vmatprep.mubr.f32.mxu0 0.0
  %1654 = vmatmul.mubr.f32.gmra.mrb[0].mxu0 %v1508
  %v1655 = vpop.f32.mrb[0].mxu0
  %v1656 = vadd.f32 %v1500, %v1655
  %v1657 = vpop.f32.mrb[0].mxu0
  %v1658 = vadd.f32 %v1500, %v1657
  %1659 = vdwg.mxu0
  %v1660 = vld [vmem:[%s9] sm:$0xf]
  %1662 = vrot.lane.b32.xlu0 %v1660, 124
  %v1663 = vpop.permute.xlu0 %1662
  %v1666 = vcombine.high %v1290, %v1290
  %v1667 = vcombine.high %v1291, %v1291
  %v1668 = vsel %vm1506, %v1663, 0
  %v1670 = vsel %vm211, %v1290, 0
  %v1672 = vsel %vm211, %v1666, 0
  %v1674 = vsel %vm211, %v1291, 0
  %v1676 = vsel %vm211, %v1667, 0
  %1678 = vmatprep.subr.mxu0 %v1672
  %1679 = vmatpush1.msra.mxu0 %v1670
  %1680 = vmatprep.subr.mxu0 0.0
  %1681 = vmatpush1.msra.mxu0 0.0
  %1682 = vmatprep.subr.mxu0 0.0
  %1683 = vmatpush1.msra.mxu0 0.0
  %1684 = vmatprep.subr.mxu0 0.0
  %1685 = vmatpush1.msra.mxu0 0.0
  %1686 = vmatprep.subr.mxu0 0.0
  %1687 = vmatpush1.msra.mxu0 0.0
  %1688 = vmatprep.subr.mxu0 0.0
  %1689 = vmatpush1.msra.mxu0 0.0
  %1690 = vmatprep.subr.mxu0 0.0
  %1691 = vmatpush1.msra.mxu0 0.0
  %1692 = vmatprep.subr.mxu0 0.0
  %1693 = vmatpush1.msra.mxu0 0.0
  %1694 = vmatprep.subr.mxu0 0.0
  %1695 = vmatpush1.msra.mxu0 0.0
  %1696 = vmatprep.subr.mxu0 0.0
  %1697 = vmatpush1.msra.mxu0 0.0
  %1698 = vmatprep.subr.mxu0 0.0
  %1699 = vmatpush1.msra.mxu0 0.0
  %1700 = vmatprep.subr.mxu0 0.0
  %1701 = vmatpush1.msra.mxu0 0.0
  %1702 = vmatprep.subr.mxu0 0.0
  %1703 = vmatpush1.msra.mxu0 0.0
  %1704 = vmatprep.subr.mxu0 0.0
  %1705 = vmatpush1.msra.mxu0 0.0
  %1706 = vmatprep.subr.mxu0 0.0
  %1707 = vmatpush1.msra.mxu0 0.0
  %1708 = vmatprep.subr.mxu0 0.0
  %1709 = vmatpush1.msra.mxu0 0.0
  %1710 = vmatprep.subr.mxu0 0.0
  %1711 = vmatpush1.msra.mxu0 0.0
  %1712 = vmatprep.subr.mxu0 0.0
  %1713 = vmatpush1.msra.mxu0 0.0
  %1714 = vmatprep.subr.mxu0 0.0
  %1715 = vmatpush1.msra.mxu0 0.0
  %1716 = vmatprep.subr.mxu0 0.0
  %1717 = vmatpush1.msra.mxu0 0.0
  %1718 = vmatprep.subr.mxu0 0.0
  %1719 = vmatpush1.msra.mxu0 0.0
  %1720 = vmatprep.subr.mxu0 0.0
  %1721 = vmatpush1.msra.mxu0 0.0
  %1722 = vmatprep.subr.mxu0 0.0
  %1723 = vmatpush1.msra.mxu0 0.0
  %1724 = vmatprep.subr.mxu0 0.0
  %1725 = vmatpush1.msra.mxu0 0.0
  %1726 = vmatprep.subr.mxu0 0.0
  %1727 = vmatpush1.msra.mxu0 0.0
  %1728 = vmatprep.subr.mxu0 0.0
  %1729 = vmatpush1.msra.mxu0 0.0
  %1730 = vmatprep.subr.mxu0 0.0
  %1731 = vmatpush1.msra.mxu0 0.0
  %1732 = vmatprep.subr.mxu0 0.0
  %1733 = vmatpush1.msra.mxu0 0.0
  %1734 = vmatprep.subr.mxu0 0.0
  %1735 = vmatpush1.msra.mxu0 0.0
  %1736 = vmatprep.subr.mxu0 0.0
  %1737 = vmatpush1.msra.mxu0 0.0
  %1738 = vmatprep.subr.mxu0 0.0
  %1739 = vmatpush1.msra.mxu0 0.0
  %1740 = vmatprep.subr.mxu0 0.0
  %1741 = vmatpush1.msra.mxu0 0.0
  %1742 = vmatprep.mubr.f32.mxu0 0.0
  %1743 = vmatmul.mubr.f32.gmra.mrb[0].mxu0 %v1668
  %v1744 = vpop.f32.mrb[0].mxu0
  %v1745 = vadd.f32 0.0, %v1744
  %v1746 = vpop.f32.mrb[0].mxu0
  %v1747 = vadd.f32 0.0, %v1746
  %1748 = vdwg.mxu0
  %1749 = vmatprep.subr.mxu0 %v1676
  %1750 = vmatpush1.msra.mxu0 %v1674
  %1751 = vmatprep.subr.mxu0 0.0
  %1752 = vmatpush1.msra.mxu0 0.0
  %1753 = vmatprep.subr.mxu0 0.0
  %1754 = vmatpush1.msra.mxu0 0.0
  %1755 = vmatprep.subr.mxu0 0.0
  %1756 = vmatpush1.msra.mxu0 0.0
  %1757 = vmatprep.subr.mxu0 0.0
  %1758 = vmatpush1.msra.mxu0 0.0
  %1759 = vmatprep.subr.mxu0 0.0
  %1760 = vmatpush1.msra.mxu0 0.0
  %1761 = vmatprep.subr.mxu0 0.0
  %1762 = vmatpush1.msra.mxu0 0.0
  %1763 = vmatprep.subr.mxu0 0.0
  %1764 = vmatpush1.msra.mxu0 0.0
  %1765 = vmatprep.subr.mxu0 0.0
  %1766 = vmatpush1.msra.mxu0 0.0
  %1767 = vmatprep.subr.mxu0 0.0
  %1768 = vmatpush1.msra.mxu0 0.0
  %1769 = vmatprep.subr.mxu0 0.0
  %1770 = vmatpush1.msra.mxu0 0.0
  %1771 = vmatprep.subr.mxu0 0.0
  %1772 = vmatpush1.msra.mxu0 0.0
  %1773 = vmatprep.subr.mxu0 0.0
  %1774 = vmatpush1.msra.mxu0 0.0
  %1775 = vmatprep.subr.mxu0 0.0
  %1776 = vmatpush1.msra.mxu0 0.0
  %1777 = vmatprep.subr.mxu0 0.0
  %1778 = vmatpush1.msra.mxu0 0.0
  %1779 = vmatprep.subr.mxu0 0.0
  %1780 = vmatpush1.msra.mxu0 0.0
  %1781 = vmatprep.subr.mxu0 0.0
  %1782 = vmatpush1.msra.mxu0 0.0
  %1783 = vmatprep.subr.mxu0 0.0
  %1784 = vmatpush1.msra.mxu0 0.0
  %1785 = vmatprep.subr.mxu0 0.0
  %1786 = vmatpush1.msra.mxu0 0.0
  %1787 = vmatprep.subr.mxu0 0.0
  %1788 = vmatpush1.msra.mxu0 0.0
  %1789 = vmatprep.subr.mxu0 0.0
  %1790 = vmatpush1.msra.mxu0 0.0
  %1791 = vmatprep.subr.mxu0 0.0
  %1792 = vmatpush1.msra.mxu0 0.0
  %1793 = vmatprep.subr.mxu0 0.0
  %1794 = vmatpush1.msra.mxu0 0.0
  %1795 = vmatprep.subr.mxu0 0.0
  %1796 = vmatpush1.msra.mxu0 0.0
  %1797 = vmatprep.subr.mxu0 0.0
  %1798 = vmatpush1.msra.mxu0 0.0
  %1799 = vmatprep.subr.mxu0 0.0
  %1800 = vmatpush1.msra.mxu0 0.0
  %1801 = vmatprep.subr.mxu0 0.0
  %1802 = vmatpush1.msra.mxu0 0.0
  %1803 = vmatprep.subr.mxu0 0.0
  %1804 = vmatpush1.msra.mxu0 0.0
  %1805 = vmatprep.subr.mxu0 0.0
  %1806 = vmatpush1.msra.mxu0 0.0
  %1807 = vmatprep.subr.mxu0 0.0
  %1808 = vmatpush1.msra.mxu0 0.0
  %1809 = vmatprep.subr.mxu0 0.0
  %1810 = vmatpush1.msra.mxu0 0.0
  %1811 = vmatprep.subr.mxu0 0.0
  %1812 = vmatpush1.msra.mxu0 0.0
  %1813 = vmatprep.mubr.f32.mxu0 0.0
  %1814 = vmatmul.mubr.f32.gmra.mrb[0].mxu0 %v1668
  %v1815 = vpop.f32.mrb[0].mxu0
  %v1816 = vadd.f32 0.0, %v1815
  %v1817 = vpop.f32.mrb[0].mxu0
  %v1818 = vadd.f32 0.0, %v1817
  %1819 = vdwg.mxu0
  %v1822 = vcombine.high %v1070, %v1070
  %v1823 = vcombine.high %v1071, %v1071
  %v1824 = vsel %vm1506, %v1660, 0
  %v1826 = vsel %vm211, %v1070, 0
  %v1828 = vsel %vm211, %v1822, 0
  %v1830 = vsel %vm211, %v1071, 0
  %v1832 = vsel %vm211, %v1823, 0
  %1834 = vmatprep.subr.mxu0 %v1828
  %1835 = vmatpush1.msra.mxu0 %v1826
  %1836 = vmatprep.subr.mxu0 0.0
  %1837 = vmatpush1.msra.mxu0 0.0
  %1838 = vmatprep.subr.mxu0 0.0
  %1839 = vmatpush1.msra.mxu0 0.0
  %1840 = vmatprep.subr.mxu0 0.0
  %1841 = vmatpush1.msra.mxu0 0.0
  %1842 = vmatprep.subr.mxu0 0.0
  %1843 = vmatpush1.msra.mxu0 0.0
  %1844 = vmatprep.subr.mxu0 0.0
  %1845 = vmatpush1.msra.mxu0 0.0
  %1846 = vmatprep.subr.mxu0 0.0
  %1847 = vmatpush1.msra.mxu0 0.0
  %1848 = vmatprep.subr.mxu0 0.0
  %1849 = vmatpush1.msra.mxu0 0.0
  %1850 = vmatprep.subr.mxu0 0.0
  %1851 = vmatpush1.msra.mxu0 0.0
  %1852 = vmatprep.subr.mxu0 0.0
  %1853 = vmatpush1.msra.mxu0 0.0
  %1854 = vmatprep.subr.mxu0 0.0
  %1855 = vmatpush1.msra.mxu0 0.0
  %1856 = vmatprep.subr.mxu0 0.0
  %1857 = vmatpush1.msra.mxu0 0.0
  %1858 = vmatprep.subr.mxu0 0.0
  %1859 = vmatpush1.msra.mxu0 0.0
  %1860 = vmatprep.subr.mxu0 0.0
  %1861 = vmatpush1.msra.mxu0 0.0
  %1862 = vmatprep.subr.mxu0 0.0
  %1863 = vmatpush1.msra.mxu0 0.0
  %1864 = vmatprep.subr.mxu0 0.0
  %1865 = vmatpush1.msra.mxu0 0.0
  %1866 = vmatprep.subr.mxu0 0.0
  %1867 = vmatpush1.msra.mxu0 0.0
  %1868 = vmatprep.subr.mxu0 0.0
  %1869 = vmatpush1.msra.mxu0 0.0
  %1870 = vmatprep.subr.mxu0 0.0
  %1871 = vmatpush1.msra.mxu0 0.0
  %1872 = vmatprep.subr.mxu0 0.0
  %1873 = vmatpush1.msra.mxu0 0.0
  %1874 = vmatprep.subr.mxu0 0.0
  %1875 = vmatpush1.msra.mxu0 0.0
  %1876 = vmatprep.subr.mxu0 0.0
  %1877 = vmatpush1.msra.mxu0 0.0
  %1878 = vmatprep.subr.mxu0 0.0
  %1879 = vmatpush1.msra.mxu0 0.0
  %1880 = vmatprep.subr.mxu0 0.0
  %1881 = vmatpush1.msra.mxu0 0.0
  %1882 = vmatprep.subr.mxu0 0.0
  %1883 = vmatpush1.msra.mxu0 0.0
  %1884 = vmatprep.subr.mxu0 0.0
  %1885 = vmatpush1.msra.mxu0 0.0
  %1886 = vmatprep.subr.mxu0 0.0
  %1887 = vmatpush1.msra.mxu0 0.0
  %1888 = vmatprep.subr.mxu0 0.0
  %1889 = vmatpush1.msra.mxu0 0.0
  %1890 = vmatprep.subr.mxu0 0.0
  %1891 = vmatpush1.msra.mxu0 0.0
  %1892 = vmatprep.subr.mxu0 0.0
  %1893 = vmatpush1.msra.mxu0 0.0
  %1894 = vmatprep.subr.mxu0 0.0
  %1895 = vmatpush1.msra.mxu0 0.0
  %1896 = vmatprep.subr.mxu0 0.0
  %1897 = vmatpush1.msra.mxu0 0.0
  %1898 = vmatprep.mubr.f32.mxu0 0.0
  %1899 = vmatmul.mubr.f32.gmra.mrb[0].mxu0 %v1824
  %v1900 = vpop.f32.mrb[0].mxu0
  %v1901 = vadd.f32 %v1745, %v1900
  %v1902 = vpop.f32.mrb[0].mxu0
  %v1903 = vadd.f32 %v1747, %v1902
  %1904 = vdwg.mxu0
  %1905 = vmatprep.subr.mxu0 %v1832
  %1906 = vmatpush1.msra.mxu0 %v1830
  %1907 = vmatprep.subr.mxu0 0.0
  %1908 = vmatpush1.msra.mxu0 0.0
  %1909 = vmatprep.subr.mxu0 0.0
  %1910 = vmatpush1.msra.mxu0 0.0
  %1911 = vmatprep.subr.mxu0 0.0
  %1912 = vmatpush1.msra.mxu0 0.0
  %1913 = vmatprep.subr.mxu0 0.0
  %1914 = vmatpush1.msra.mxu0 0.0
  %1915 = vmatprep.subr.mxu0 0.0
  %1916 = vmatpush1.msra.mxu0 0.0
  %1917 = vmatprep.subr.mxu0 0.0
  %1918 = vmatpush1.msra.mxu0 0.0
  %1919 = vmatprep.subr.mxu0 0.0
  %1920 = vmatpush1.msra.mxu0 0.0
  %1921 = vmatprep.subr.mxu0 0.0
  %1922 = vmatpush1.msra.mxu0 0.0
  %1923 = vmatprep.subr.mxu0 0.0
  %1924 = vmatpush1.msra.mxu0 0.0
  %1925 = vmatprep.subr.mxu0 0.0
  %1926 = vmatpush1.msra.mxu0 0.0
  %1927 = vmatprep.subr.mxu0 0.0
  %1928 = vmatpush1.msra.mxu0 0.0
  %1929 = vmatprep.subr.mxu0 0.0
  %1930 = vmatpush1.msra.mxu0 0.0
  %1931 = vmatprep.subr.mxu0 0.0
  %1932 = vmatpush1.msra.mxu0 0.0
  %1933 = vmatprep.subr.mxu0 0.0
  %1934 = vmatpush1.msra.mxu0 0.0
  %1935 = vmatprep.subr.mxu0 0.0
  %1936 = vmatpush1.msra.mxu0 0.0
  %1937 = vmatprep.subr.mxu0 0.0
  %1938 = vmatpush1.msra.mxu0 0.0
  %1939 = vmatprep.subr.mxu0 0.0
  %1940 = vmatpush1.msra.mxu0 0.0
  %1941 = vmatprep.subr.mxu0 0.0
  %1942 = vmatpush1.msra.mxu0 0.0
  %1943 = vmatprep.subr.mxu0 0.0
  %1944 = vmatpush1.msra.mxu0 0.0
  %1945 = vmatprep.subr.mxu0 0.0
  %1946 = vmatpush1.msra.mxu0 0.0
  %1947 = vmatprep.subr.mxu0 0.0
  %1948 = vmatpush1.msra.mxu0 0.0
  %1949 = vmatprep.subr.mxu0 0.0
  %1950 = vmatpush1.msra.mxu0 0.0
  %1951 = vmatprep.subr.mxu0 0.0
  %1952 = vmatpush1.msra.mxu0 0.0
  %1953 = vmatprep.subr.mxu0 0.0
  %1954 = vmatpush1.msra.mxu0 0.0
  %1955 = vmatprep.subr.mxu0 0.0
  %1956 = vmatpush1.msra.mxu0 0.0
  %1957 = vmatprep.subr.mxu0 0.0
  %1958 = vmatpush1.msra.mxu0 0.0
  %1959 = vmatprep.subr.mxu0 0.0
  %1960 = vmatpush1.msra.mxu0 0.0
  %1961 = vmatprep.subr.mxu0 0.0
  %1962 = vmatpush1.msra.mxu0 0.0
  %1963 = vmatprep.subr.mxu0 0.0
  %1964 = vmatpush1.msra.mxu0 0.0
  %1965 = vmatprep.subr.mxu0 0.0
  %1966 = vmatpush1.msra.mxu0 0.0
  %1967 = vmatprep.subr.mxu0 0.0
  %1968 = vmatpush1.msra.mxu0 0.0
  %1969 = vmatprep.mubr.f32.mxu0 0.0
  %1970 = vmatmul.mubr.f32.gmra.mrb[0].mxu0 %v1824
  %v1971 = vpop.f32.mrb[0].mxu0
  %v1972 = vadd.f32 %v1816, %v1971
  %v1973 = vpop.f32.mrb[0].mxu0
  %v1974 = vadd.f32 %v1818, %v1973
  %1975 = vdwg.mxu0
  %1976 = vrot.lane.b32.xlu0 %v1660, 120
  %v1977 = vpop.permute.xlu0 %1976
  %v1980 = vcombine.high %v1493, %v1493
  %v1981 = vcombine.high %v1494, %v1494
  %v1982 = vsel %vm1506, %v1977, 0
  %v1984 = vsel %vm211, %v1493, 0
  %v1986 = vsel %vm211, %v1980, 0
  %v1988 = vsel %vm211, %v1494, 0
  %v1990 = vsel %vm211, %v1981, 0
  %1992 = vmatprep.subr.mxu0 %v1986
  %1993 = vmatpush1.msra.mxu0 %v1984
  %1994 = vmatprep.subr.mxu0 0.0
  %1995 = vmatpush1.msra.mxu0 0.0
  %1996 = vmatprep.subr.mxu0 0.0
  %1997 = vmatpush1.msra.mxu0 0.0
  %1998 = vmatprep.subr.mxu0 0.0
  %1999 = vmatpush1.msra.mxu0 0.0
  %2000 = vmatprep.subr.mxu0 0.0
  %2001 = vmatpush1.msra.mxu0 0.0
  %2002 = vmatprep.subr.mxu0 0.0
  %2003 = vmatpush1.msra.mxu0 0.0
  %2004 = vmatprep.subr.mxu0 0.0
  %2005 = vmatpush1.msra.mxu0 0.0
  %2006 = vmatprep.subr.mxu0 0.0
  %2007 = vmatpush1.msra.mxu0 0.0
  %2008 = vmatprep.subr.mxu0 0.0
  %2009 = vmatpush1.msra.mxu0 0.0
  %2010 = vmatprep.subr.mxu0 0.0
  %2011 = vmatpush1.msra.mxu0 0.0
  %2012 = vmatprep.subr.mxu0 0.0
  %2013 = vmatpush1.msra.mxu0 0.0
  %2014 = vmatprep.subr.mxu0 0.0
  %2015 = vmatpush1.msra.mxu0 0.0
  %2016 = vmatprep.subr.mxu0 0.0
  %2017 = vmatpush1.msra.mxu0 0.0
  %2018 = vmatprep.subr.mxu0 0.0
  %2019 = vmatpush1.msra.mxu0 0.0
  %2020 = vmatprep.subr.mxu0 0.0
  %2021 = vmatpush1.msra.mxu0 0.0
  %2022 = vmatprep.subr.mxu0 0.0
  %2023 = vmatpush1.msra.mxu0 0.0
  %2024 = vmatprep.subr.mxu0 0.0
  %2025 = vmatpush1.msra.mxu0 0.0
  %2026 = vmatprep.subr.mxu0 0.0
  %2027 = vmatpush1.msra.mxu0 0.0
  %2028 = vmatprep.subr.mxu0 0.0
  %2029 = vmatpush1.msra.mxu0 0.0
  %2030 = vmatprep.subr.mxu0 0.0
  %2031 = vmatpush1.msra.mxu0 0.0
  %2032 = vmatprep.subr.mxu0 0.0
  %2033 = vmatpush1.msra.mxu0 0.0
  %2034 = vmatprep.subr.mxu0 0.0
  %2035 = vmatpush1.msra.mxu0 0.0
  %2036 = vmatprep.subr.mxu0 0.0
  %2037 = vmatpush1.msra.mxu0 0.0
  %2038 = vmatprep.subr.mxu0 0.0
  %2039 = vmatpush1.msra.mxu0 0.0
  %2040 = vmatprep.subr.mxu0 0.0
  %2041 = vmatpush1.msra.mxu0 0.0
  %2042 = vmatprep.subr.mxu0 0.0
  %2043 = vmatpush1.msra.mxu0 0.0
  %2044 = vmatprep.subr.mxu0 0.0
  %2045 = vmatpush1.msra.mxu0 0.0
  %2046 = vmatprep.subr.mxu0 0.0
  %2047 = vmatpush1.msra.mxu0 0.0
  %2048 = vmatprep.subr.mxu0 0.0
  %2049 = vmatpush1.msra.mxu0 0.0
  %2050 = vmatprep.subr.mxu0 0.0
  %2051 = vmatpush1.msra.mxu0 0.0
  %2052 = vmatprep.subr.mxu0 0.0
  %2053 = vmatpush1.msra.mxu0 0.0
  %2054 = vmatprep.subr.mxu0 0.0
  %2055 = vmatpush1.msra.mxu0 0.0
  %2056 = vmatprep.mubr.f32.mxu0 0.0
  %2057 = vmatmul.mubr.f32.gmra.mrb[0].mxu0 %v1982
  %v2058 = vpop.f32.mrb[0].mxu0
  %v2059 = vadd.f32 0.0, %v2058
  %v2060 = vpop.f32.mrb[0].mxu0
  %v2061 = vadd.f32 0.0, %v2060
  %2062 = vdwg.mxu0
  %2063 = vmatprep.subr.mxu0 %v1990
  %2064 = vmatpush1.msra.mxu0 %v1988
  %2065 = vmatprep.subr.mxu0 0.0
  %2066 = vmatpush1.msra.mxu0 0.0
  %2067 = vmatprep.subr.mxu0 0.0
  %2068 = vmatpush1.msra.mxu0 0.0
  %2069 = vmatprep.subr.mxu0 0.0
  %2070 = vmatpush1.msra.mxu0 0.0
  %2071 = vmatprep.subr.mxu0 0.0
  %2072 = vmatpush1.msra.mxu0 0.0
  %2073 = vmatprep.subr.mxu0 0.0
  %2074 = vmatpush1.msra.mxu0 0.0
  %2075 = vmatprep.subr.mxu0 0.0
  %2076 = vmatpush1.msra.mxu0 0.0
  %2077 = vmatprep.subr.mxu0 0.0
  %2078 = vmatpush1.msra.mxu0 0.0
  %2079 = vmatprep.subr.mxu0 0.0
  %2080 = vmatpush1.msra.mxu0 0.0
  %2081 = vmatprep.subr.mxu0 0.0
  %2082 = vmatpush1.msra.mxu0 0.0
  %2083 = vmatprep.subr.mxu0 0.0
  %2084 = vmatpush1.msra.mxu0 0.0
  %2085 = vmatprep.subr.mxu0 0.0
  %2086 = vmatpush1.msra.mxu0 0.0
  %2087 = vmatprep.subr.mxu0 0.0
  %2088 = vmatpush1.msra.mxu0 0.0
  %2089 = vmatprep.subr.mxu0 0.0
  %2090 = vmatpush1.msra.mxu0 0.0
  %2091 = vmatprep.subr.mxu0 0.0
  %2092 = vmatpush1.msra.mxu0 0.0
  %2093 = vmatprep.subr.mxu0 0.0
  %2094 = vmatpush1.msra.mxu0 0.0
  %2095 = vmatprep.subr.mxu0 0.0
  %2096 = vmatpush1.msra.mxu0 0.0
  %2097 = vmatprep.subr.mxu0 0.0
  %2098 = vmatpush1.msra.mxu0 0.0
  %2099 = vmatprep.subr.mxu0 0.0
  %2100 = vmatpush1.msra.mxu0 0.0
  %2101 = vmatprep.subr.mxu0 0.0
  %2102 = vmatpush1.msra.mxu0 0.0
  %2103 = vmatprep.subr.mxu0 0.0
  %2104 = vmatpush1.msra.mxu0 0.0
  %2105 = vmatprep.subr.mxu0 0.0
  %2106 = vmatpush1.msra.mxu0 0.0
  %2107 = vmatprep.subr.mxu0 0.0
  %2108 = vmatpush1.msra.mxu0 0.0
  %2109 = vmatprep.subr.mxu0 0.0
  %2110 = vmatpush1.msra.mxu0 0.0
  %2111 = vmatprep.subr.mxu0 0.0
  %2112 = vmatpush1.msra.mxu0 0.0
  %2113 = vmatprep.subr.mxu0 0.0
  %2114 = vmatpush1.msra.mxu0 0.0
  %2115 = vmatprep.subr.mxu0 0.0
  %2116 = vmatpush1.msra.mxu0 0.0
  %2117 = vmatprep.subr.mxu0 0.0
  %2118 = vmatpush1.msra.mxu0 0.0
  %2119 = vmatprep.subr.mxu0 0.0
  %2120 = vmatpush1.msra.mxu0 0.0
  %2121 = vmatprep.subr.mxu0 0.0
  %2122 = vmatpush1.msra.mxu0 0.0
  %2123 = vmatprep.subr.mxu0 0.0
  %2124 = vmatpush1.msra.mxu0 0.0
  %2125 = vmatprep.subr.mxu0 0.0
  %2126 = vmatpush1.msra.mxu0 0.0
  %2127 = vmatprep.mubr.f32.mxu0 0.0
  %2128 = vmatmul.mubr.f32.gmra.mrb[0].mxu0 %v1982
  %v2129 = vpop.f32.mrb[0].mxu0
  %v2130 = vadd.f32 0.0, %v2129
  %v2131 = vpop.f32.mrb[0].mxu0
  %v2132 = vadd.f32 0.0, %v2131
  %2133 = vdwg.mxu0
  %v2134 = vadd.f32 %v1901, %v2059
  %v2135 = vadd.f32 %v1903, %v2061
  %v2136 = vadd.f32 %v1972, %v2130
  %v2137 = vadd.f32 %v1974, %v2132
  %2138 = vrot.lane.b32.xlu0 %v1660, 116
  %v2139 = vpop.permute.xlu0 %2138
  %v2140 = vsel %vm1506, %v2139, 0
  %v2143 = vsel %vm211, %v1585, 0
  %v2146 = vsel %vm211, %v1587, 0
  %v2149 = vsel %vm211, %v1656, 0
  %v2152 = vsel %vm211, %v1658, 0
  %2154 = vmatprep.subr.mxu0 %v2146
  %2155 = vmatpush1.msra.mxu0 %v2143
  %2156 = vmatprep.subr.mxu0 0.0
  %2157 = vmatpush1.msra.mxu0 0.0
  %2158 = vmatprep.subr.mxu0 0.0
  %2159 = vmatpush1.msra.mxu0 0.0
  %2160 = vmatprep.subr.mxu0 0.0
  %2161 = vmatpush1.msra.mxu0 0.0
  %2162 = vmatprep.subr.mxu0 0.0
  %2163 = vmatpush1.msra.mxu0 0.0
  %2164 = vmatprep.subr.mxu0 0.0
  %2165 = vmatpush1.msra.mxu0 0.0
  %2166 = vmatprep.subr.mxu0 0.0
  %2167 = vmatpush1.msra.mxu0 0.0
  %2168 = vmatprep.subr.mxu0 0.0
  %2169 = vmatpush1.msra.mxu0 0.0
  %2170 = vmatprep.subr.mxu0 0.0
  %2171 = vmatpush1.msra.mxu0 0.0
  %2172 = vmatprep.subr.mxu0 0.0
  %2173 = vmatpush1.msra.mxu0 0.0
  %2174 = vmatprep.subr.mxu0 0.0
  %2175 = vmatpush1.msra.mxu0 0.0
  %2176 = vmatprep.subr.mxu0 0.0
  %2177 = vmatpush1.msra.mxu0 0.0
  %2178 = vmatprep.subr.mxu0 0.0
  %2179 = vmatpush1.msra.mxu0 0.0
  %2180 = vmatprep.subr.mxu0 0.0
  %2181 = vmatpush1.msra.mxu0 0.0
  %2182 = vmatprep.subr.mxu0 0.0
  %2183 = vmatpush1.msra.mxu0 0.0
  %2184 = vmatprep.subr.mxu0 0.0
  %2185 = vmatpush1.msra.mxu0 0.0
  %2186 = vmatprep.subr.mxu0 0.0
  %2187 = vmatpush1.msra.mxu0 0.0
  %2188 = vmatprep.subr.mxu0 0.0
  %2189 = vmatpush1.msra.mxu0 0.0
  %2190 = vmatprep.subr.mxu0 0.0
  %2191 = vmatpush1.msra.mxu0 0.0
  %2192 = vmatprep.subr.mxu0 0.0
  %2193 = vmatpush1.msra.mxu0 0.0
  %2194 = vmatprep.subr.mxu0 0.0
  %2195 = vmatpush1.msra.mxu0 0.0
  %2196 = vmatprep.subr.mxu0 0.0
  %2197 = vmatpush1.msra.mxu0 0.0
  %2198 = vmatprep.subr.mxu0 0.0
  %2199 = vmatpush1.msra.mxu0 0.0
  %2200 = vmatprep.subr.mxu0 0.0
  %2201 = vmatpush1.msra.mxu0 0.0
  %2202 = vmatprep.subr.mxu0 0.0
  %2203 = vmatpush1.msra.mxu0 0.0
  %2204 = vmatprep.subr.mxu0 0.0
  %2205 = vmatpush1.msra.mxu0 0.0
  %2206 = vmatprep.subr.mxu0 0.0
  %2207 = vmatpush1.msra.mxu0 0.0
  %2208 = vmatprep.subr.mxu0 0.0
  %2209 = vmatpush1.msra.mxu0 0.0
  %2210 = vmatprep.subr.mxu0 0.0
  %2211 = vmatpush1.msra.mxu0 0.0
  %2212 = vmatprep.subr.mxu0 0.0
  %2213 = vmatpush1.msra.mxu0 0.0
  %2214 = vmatprep.subr.mxu0 0.0
  %2215 = vmatpush1.msra.mxu0 0.0
  %2216 = vmatprep.subr.mxu0 0.0
  %2217 = vmatpush1.msra.mxu0 0.0
  %2218 = vmatprep.mubr.f32.mxu0 0.0
  %2219 = vmatmul.mubr.f32.gmra.mrb[0].mxu0 %v2140
  %v2220 = vpop.f32.mrb[0].mxu0
  %v2221 = vadd.f32 0.0, %v2220
  %v2222 = vpop.f32.mrb[0].mxu0
  %v2223 = vadd.f32 0.0, %v2222
  %2224 = vdwg.mxu0
  %2225 = vmatprep.subr.mxu0 %v2152
  %2226 = vmatpush1.msra.mxu0 %v2149
  %2227 = vmatprep.subr.mxu0 0.0
  %2228 = vmatpush1.msra.mxu0 0.0
  %2229 = vmatprep.subr.mxu0 0.0
  %2230 = vmatpush1.msra.mxu0 0.0
  %2231 = vmatprep.subr.mxu0 0.0
  %2232 = vmatpush1.msra.mxu0 0.0
  %2233 = vmatprep.subr.mxu0 0.0
  %2234 = vmatpush1.msra.mxu0 0.0
  %2235 = vmatprep.subr.mxu0 0.0
  %2236 = vmatpush1.msra.mxu0 0.0
  %2237 = vmatprep.subr.mxu0 0.0
  %2238 = vmatpush1.msra.mxu0 0.0
  %2239 = vmatprep.subr.mxu0 0.0
  %2240 = vmatpush1.msra.mxu0 0.0
  %2241 = vmatprep.subr.mxu0 0.0
  %2242 = vmatpush1.msra.mxu0 0.0
  %2243 = vmatprep.subr.mxu0 0.0
  %2244 = vmatpush1.msra.mxu0 0.0
  %2245 = vmatprep.subr.mxu0 0.0
  %2246 = vmatpush1.msra.mxu0 0.0
  %2247 = vmatprep.subr.mxu0 0.0
  %2248 = vmatpush1.msra.mxu0 0.0
  %2249 = vmatprep.subr.mxu0 0.0
  %2250 = vmatpush1.msra.mxu0 0.0
  %2251 = vmatprep.subr.mxu0 0.0
  %2252 = vmatpush1.msra.mxu0 0.0
  %2253 = vmatprep.subr.mxu0 0.0
  %2254 = vmatpush1.msra.mxu0 0.0
  %2255 = vmatprep.subr.mxu0 0.0
  %2256 = vmatpush1.msra.mxu0 0.0
  %2257 = vmatprep.subr.mxu0 0.0
  %2258 = vmatpush1.msra.mxu0 0.0
  %2259 = vmatprep.subr.mxu0 0.0
  %2260 = vmatpush1.msra.mxu0 0.0
  %2261 = vmatprep.subr.mxu0 0.0
  %2262 = vmatpush1.msra.mxu0 0.0
  %2263 = vmatprep.subr.mxu0 0.0
  %2264 = vmatpush1.msra.mxu0 0.0
  %2265 = vmatprep.subr.mxu0 0.0
  %2266 = vmatpush1.msra.mxu0 0.0
  %2267 = vmatprep.subr.mxu0 0.0
  %2268 = vmatpush1.msra.mxu0 0.0
  %2269 = vmatprep.subr.mxu0 0.0
  %2270 = vmatpush1.msra.mxu0 0.0
  %2271 = vmatprep.subr.mxu0 0.0
  %2272 = vmatpush1.msra.mxu0 0.0
  %2273 = vmatprep.subr.mxu0 0.0
  %2274 = vmatpush1.msra.mxu0 0.0
  %2275 = vmatprep.subr.mxu0 0.0
  %2276 = vmatpush1.msra.mxu0 0.0
  %2277 = vmatprep.subr.mxu0 0.0
  %2278 = vmatpush1.msra.mxu0 0.0
  %2279 = vmatprep.subr.mxu0 0.0
  %2280 = vmatpush1.msra.mxu0 0.0
  %2281 = vmatprep.subr.mxu0 0.0
  %2282 = vmatpush1.msra.mxu0 0.0
  %2283 = vmatprep.subr.mxu0 0.0
  %2284 = vmatpush1.msra.mxu0 0.0
  %2285 = vmatprep.subr.mxu0 0.0
  %2286 = vmatpush1.msra.mxu0 0.0
  %2287 = vmatprep.subr.mxu0 0.0
  %2288 = vmatpush1.msra.mxu0 0.0
  %2289 = vmatprep.mubr.f32.mxu0 0.0
  %2290 = vmatmul.mubr.f32.gmra.mrb[0].mxu0 %v2140
  %v2291 = vpop.f32.mrb[0].mxu0
  %v2292 = vadd.f32 0.0, %v2291
  %v2293 = vpop.f32.mrb[0].mxu0
  %v2294 = vadd.f32 0.0, %v2293
  %2295 = vdwg.mxu0
  %v2296 = vadd.f32 %v2134, %v2221
  %v2297 = vadd.f32 %v2135, %v2223
  %v2298 = vadd.f32 %v2136, %v2292
  %v2299 = vadd.f32 %v2137, %v2294
  %v2304 = vcombine.low %v2296, %v2297
  %v2305 = vcombine.low %v2298, %v2299
  %v2308 = vadd.f32 %v53, %v2304
  %v2309 = vadd.f32 %v54, %v2305
  %v2310 = vadd.f32 %v2308, %v1286
  %v2311 = vadd.f32 %v2309, %v1286
  %v2312 = vmax.f32 %v2310, 0.0
  %v2313 = vmax.f32 %v2311, 0.0
  %v2314 = vld [vmem:[%s14] sm:$0xff]
  %v2315 = vld [vmem:[%s15] sm:$0xff]
  %2317 = vset.pattern.permute.xlu0 0
  %2318 = vperm.xlu0 %2317, %v2315
  %v2319 = vpop.permute.xlu0 %2318
  %v2323 = vcombine.high %v2312, %v2312
  %v2324 = vcombine.high %v2313, %v2313
  %v2326 = vsel %vm1506, %v2314, 0
  %v2328 = vsel %vm211, %v2312, 0
  %v2330 = vsel %vm211, %v2323, 0
  %v2332 = vsel %vm211, %v2313, 0
  %v2334 = vsel %vm211, %v2324, 0
  %2336 = vmatprep.subr.mxu0 %v2330
  %2337 = vmatpush1.msra.mxu0 %v2328
  %2338 = vmatprep.subr.mxu0 0.0
  %2339 = vmatpush1.msra.mxu0 0.0
  %2340 = vmatprep.subr.mxu0 0.0
  %2341 = vmatpush1.msra.mxu0 0.0
  %2342 = vmatprep.subr.mxu0 0.0
  %2343 = vmatpush1.msra.mxu0 0.0
  %2344 = vmatprep.subr.mxu0 0.0
  %2345 = vmatpush1.msra.mxu0 0.0
  %2346 = vmatprep.subr.mxu0 0.0
  %2347 = vmatpush1.msra.mxu0 0.0
  %2348 = vmatprep.subr.mxu0 0.0
  %2349 = vmatpush1.msra.mxu0 0.0
  %2350 = vmatprep.subr.mxu0 0.0
  %2351 = vmatpush1.msra.mxu0 0.0
  %2352 = vmatprep.subr.mxu0 0.0
  %2353 = vmatpush1.msra.mxu0 0.0
  %2354 = vmatprep.subr.mxu0 0.0
  %2355 = vmatpush1.msra.mxu0 0.0
  %2356 = vmatprep.subr.mxu0 0.0
  %2357 = vmatpush1.msra.mxu0 0.0
  %2358 = vmatprep.subr.mxu0 0.0
  %2359 = vmatpush1.msra.mxu0 0.0
  %2360 = vmatprep.subr.mxu0 0.0
  %2361 = vmatpush1.msra.mxu0 0.0
  %2362 = vmatprep.subr.mxu0 0.0
  %2363 = vmatpush1.msra.mxu0 0.0
  %2364 = vmatprep.subr.mxu0 0.0
  %2365 = vmatpush1.msra.mxu0 0.0
  %2366 = vmatprep.subr.mxu0 0.0
  %2367 = vmatpush1.msra.mxu0 0.0
  %2368 = vmatprep.subr.mxu0 0.0
  %2369 = vmatpush1.msra.mxu0 0.0
  %2370 = vmatprep.subr.mxu0 0.0
  %2371 = vmatpush1.msra.mxu0 0.0
  %2372 = vmatprep.subr.mxu0 0.0
  %2373 = vmatpush1.msra.mxu0 0.0
  %2374 = vmatprep.subr.mxu0 0.0
  %2375 = vmatpush1.msra.mxu0 0.0
  %2376 = vmatprep.subr.mxu0 0.0
  %2377 = vmatpush1.msra.mxu0 0.0
  %2378 = vmatprep.subr.mxu0 0.0
  %2379 = vmatpush1.msra.mxu0 0.0
  %2380 = vmatprep.subr.mxu0 0.0
  %2381 = vmatpush1.msra.mxu0 0.0
  %2382 = vmatprep.subr.mxu0 0.0
  %2383 = vmatpush1.msra.mxu0 0.0
  %2384 = vmatprep.subr.mxu0 0.0
  %2385 = vmatpush1.msra.mxu0 0.0
  %2386 = vmatprep.subr.mxu0 0.0
  %2387 = vmatpush1.msra.mxu0 0.0
  %2388 = vmatprep.subr.mxu0 0.0
  %2389 = vmatpush1.msra.mxu0 0.0
  %2390 = vmatprep.subr.mxu0 0.0
  %2391 = vmatpush1.msra.mxu0 0.0
  %2392 = vmatprep.subr.mxu0 0.0
  %2393 = vmatpush1.msra.mxu0 0.0
  %2394 = vmatprep.subr.mxu0 0.0
  %2395 = vmatpush1.msra.mxu0 0.0
  %2396 = vmatprep.subr.mxu0 0.0
  %2397 = vmatpush1.msra.mxu0 0.0
  %2398 = vmatprep.subr.mxu0 0.0
  %2399 = vmatpush1.msra.mxu0 0.0
  %2400 = vmatprep.mubr.f32.mxu0 0.0
  %2401 = vmatmul.mubr.f32.gmra.mrb[0].mxu0 %v2326
  %v2402 = vpop.f32.mrb[0].mxu0
  %v2403 = vadd.f32 %v2319, %v2402
  %v2404 = vpop.f32.mrb[0].mxu0
  %v2405 = vadd.f32 %v2319, %v2404
  %2406 = vdwg.mxu0
  %2407 = vmatprep.subr.mxu0 %v2334
  %2408 = vmatpush1.msra.mxu0 %v2332
  %2409 = vmatprep.subr.mxu0 0.0
  %2410 = vmatpush1.msra.mxu0 0.0
  %2411 = vmatprep.subr.mxu0 0.0
  %2412 = vmatpush1.msra.mxu0 0.0
  %2413 = vmatprep.subr.mxu0 0.0
  %2414 = vmatpush1.msra.mxu0 0.0
  %2415 = vmatprep.subr.mxu0 0.0
  %2416 = vmatpush1.msra.mxu0 0.0
  %2417 = vmatprep.subr.mxu0 0.0
  %2418 = vmatpush1.msra.mxu0 0.0
  %2419 = vmatprep.subr.mxu0 0.0
  %2420 = vmatpush1.msra.mxu0 0.0
  %2421 = vmatprep.subr.mxu0 0.0
  %2422 = vmatpush1.msra.mxu0 0.0
  %2423 = vmatprep.subr.mxu0 0.0
  %2424 = vmatpush1.msra.mxu0 0.0
  %2425 = vmatprep.subr.mxu0 0.0
  %2426 = vmatpush1.msra.mxu0 0.0
  %2427 = vmatprep.subr.mxu0 0.0
  %2428 = vmatpush1.msra.mxu0 0.0
  %2429 = vmatprep.subr.mxu0 0.0
  %2430 = vmatpush1.msra.mxu0 0.0
  %2431 = vmatprep.subr.mxu0 0.0
  %2432 = vmatpush1.msra.mxu0 0.0
  %2433 = vmatprep.subr.mxu0 0.0
  %2434 = vmatpush1.msra.mxu0 0.0
  %2435 = vmatprep.subr.mxu0 0.0
  %2436 = vmatpush1.msra.mxu0 0.0
  %2437 = vmatprep.subr.mxu0 0.0
  %2438 = vmatpush1.msra.mxu0 0.0
  %2439 = vmatprep.subr.mxu0 0.0
  %2440 = vmatpush1.msra.mxu0 0.0
  %2441 = vmatprep.subr.mxu0 0.0
  %2442 = vmatpush1.msra.mxu0 0.0
  %2443 = vmatprep.subr.mxu0 0.0
  %2444 = vmatpush1.msra.mxu0 0.0
  %2445 = vmatprep.subr.mxu0 0.0
  %2446 = vmatpush1.msra.mxu0 0.0
  %2447 = vmatprep.subr.mxu0 0.0
  %2448 = vmatpush1.msra.mxu0 0.0
  %2449 = vmatprep.subr.mxu0 0.0
  %2450 = vmatpush1.msra.mxu0 0.0
  %2451 = vmatprep.subr.mxu0 0.0
  %2452 = vmatpush1.msra.mxu0 0.0
  %2453 = vmatprep.subr.mxu0 0.0
  %2454 = vmatpush1.msra.mxu0 0.0
  %2455 = vmatprep.subr.mxu0 0.0
  %2456 = vmatpush1.msra.mxu0 0.0
  %2457 = vmatprep.subr.mxu0 0.0
  %2458 = vmatpush1.msra.mxu0 0.0
  %2459 = vmatprep.subr.mxu0 0.0
  %2460 = vmatpush1.msra.mxu0 0.0
  %2461 = vmatprep.subr.mxu0 0.0
  %2462 = vmatpush1.msra.mxu0 0.0
  %2463 = vmatprep.subr.mxu0 0.0
  %2464 = vmatpush1.msra.mxu0 0.0
  %2465 = vmatprep.subr.mxu0 0.0
  %2466 = vmatpush1.msra.mxu0 0.0
  %2467 = vmatprep.subr.mxu0 0.0
  %2468 = vmatpush1.msra.mxu0 0.0
  %2469 = vmatprep.subr.mxu0 0.0
  %2470 = vmatpush1.msra.mxu0 0.0
  %2471 = vmatprep.mubr.f32.mxu0 0.0
  %2472 = vmatmul.mubr.f32.gmra.mrb[0].mxu0 %v2326
  %v2473 = vpop.f32.mrb[0].mxu0
  %v2474 = vadd.f32 %v2319, %v2473
  %v2475 = vpop.f32.mrb[0].mxu0
  %v2476 = vadd.f32 %v2319, %v2475
  %2477 = vdwg.mxu0
  %2478 = vst [vmem:[%s16] sm:$0xff] %v2403
  %2479 = vst [vmem:[%s16 + $0x8] sm:$0xff] %v2405
  %2480 = vst [vmem:[%s16 + $0x10] sm:$0xff] %v2474
  %2481 = vst [vmem:[%s16 + $0x18] sm:$0xff] %v2476
  // Predicated region
  $region66: #{mdfc4_forward.1} parent=0 // pred_check
    _
  $region67: #{mdfc4_forward.1} parent=0 // pred_check_branch
    %2483 = sbr.rel (0) target = $region69
  $region68: #{mdfc4_forward.1} parent=0 // pred_region
    _
  $region69: #{mdfc4_forward.1} parent=0 // pred_fallthru
    _
  // Predicated region
  $region70: #{mdfc4_forward.1} parent=0 // pred_check
    _
  $region71: #{mdfc4_forward.1} parent=0 // pred_check_branch
    %2485 = sbr.rel (0) target = $region73
  $region72: #{mdfc4_forward.1} parent=0 // pred_region
    _
  $region73: #{mdfc4_forward.1} parent=0 // pred_fallthru
    _

</llo_original>
